<compile_context>
chip_gen: v6e
topology: v6e:2x2x1
jax: 0.10.0
libtpu: 0.0.40
codegen_flags: <defaults>
</compile_context>

<pallas_src>
import jax
import jax.numpy as jnp
from jax import lax
from jax.experimental import pallas as pl
from jax.experimental.pallas import tpu as pltpu


def _lstm_classifier_kernel(tokens_ref,   # VMEM (T, 1) int32
                            table_ref,    # VMEM (V_PAD, 4*HP) bf16 (emb@W_ih^T, gate-grouped)
                            whh_ref,      # VMEM (H, 4*HP) bf16     (W_hh^T, gate-grouped cols)
                            b_ref,        # VMEM (1, 4*HP) f32      (b_ih+b_hh, gate-grouped)
                            wout_ref,     # VMEM (H, OUT_PAD) bf16  (W_out^T, lane-padded)
                            bout_ref,     # VMEM (1, OUT_PAD) f32   (lane-padded)
                            out_ref):     # VMEM (1, OUT_PAD) f32
    T = tokens_ref.shape[0]
    H = whh_ref.shape[0]
    HP = whh_ref.shape[1] // 4           # 128-lane group per gate
    V_PAD = table_ref.shape[0]

    # ---- 1) One-hot matmul gather + folded input projection (single MXU op, off the
    #         serial recurrence chain).  pre[t] = emb[tok_t] @ W_ih^T + (b_ih + b_hh). ----
    tok = tokens_ref[...]                                            # (T, 1) i32
    vocab_ids = lax.broadcasted_iota(jnp.int32, (T, V_PAD), 1)       # (T, V_PAD)
    onehot = jnp.where(vocab_ids == tok, 1.0, 0.0).astype(jnp.bfloat16)
    pre = jnp.dot(onehot, table_ref[...],
                  preferred_element_type=jnp.float32) + b_ref[...]   # (T, 4*HP) f32

    # ---- 2) Recurrence: h/c live in vregs, one small bf16 MXU matmul per step.
    #         Gate slices start at lane offset 0 of their own vreg -> no lane rotates. ----
    whh = whh_ref[...]                                               # (H, 4*HP) bf16
    h = jnp.zeros((1, H), jnp.float32)
    c = jnp.zeros((1, H), jnp.float32)
    for t in range(T):                                               # static, fully unrolled
        gates = pre[t:t + 1, :] + jnp.dot(h.astype(jnp.bfloat16), whh,
                                          preferred_element_type=jnp.float32)  # (1, 4*HP)
        i_g = jax.nn.sigmoid(gates[:, 0 * HP:0 * HP + H])
        f_g = jax.nn.sigmoid(gates[:, 1 * HP:1 * HP + H])
        g_g = jnp.tanh(gates[:, 2 * HP:2 * HP + H])
        o_g = jax.nn.sigmoid(gates[:, 3 * HP:3 * HP + H])
        c = f_g * c + i_g * g_g
        h = o_g * jnp.tanh(c)

    # ---- 3) Lane-dense output projection (padded to 128 lanes, sliced in wrapper). ----
    out_ref[...] = (jnp.dot(h.astype(jnp.bfloat16), wout_ref[...],
                            preferred_element_type=jnp.float32) + bout_ref[...])


def lstm_classifier_forward(sentence, emb, w_ih, w_hh, b_ih, b_hh, w_out, b_out):
    """sentence: (T,) int32.  Returns tag_space of shape (1, tagset_size), float32."""
    T = int(sentence.shape[0])
    V = emb.shape[0]
    H = w_hh.shape[1]
    TAGS = w_out.shape[0]
    HP = 128                                   # per-gate lane-group width
    OUT_PAD = 128 * pl.cdiv(TAGS, 128)         # lane-dense output width
    V_PAD = 128 * pl.cdiv(V, 128)              # lane-dense one-hot width

    f32 = jnp.float32
    emb = jnp.asarray(emb, f32)
    w_ih = jnp.asarray(w_ih, f32)
    w_hh = jnp.asarray(w_hh, f32)
    b = jnp.asarray(b_ih, f32) + jnp.asarray(b_hh, f32)

    # Fold the input projection into the embedding table (setup glue, once per params).
    table = emb @ w_ih.T                       # (V, 4H): x_t @ W_ih^T == table[tok_t]

    def group_cols(m):
        """Re-layout the trailing 4H gate columns so gate k -> lanes [k*HP, k*HP+H)."""
        out = jnp.zeros(m.shape[:-1] + (4 * HP,), f32)
        for g in range(4):
            out = out.at[..., g * HP:g * HP + H].set(m[..., g * H:(g + 1) * H])
        return out

    table_g = jnp.zeros((V_PAD, 4 * HP), f32).at[:V].set(group_cols(table))
    whh_g = group_cols(w_hh.T)                                 # (H, 4*HP)
    b_g = group_cols(b.reshape(1, 4 * H))                      # (1, 4*HP)
    wout_pad = jnp.zeros((H, OUT_PAD), f32).at[:, :TAGS].set(
        jnp.asarray(w_out, f32).T)                             # (H, OUT_PAD)
    bout_pad = jnp.zeros((1, OUT_PAD), f32).at[:, :TAGS].set(
        jnp.asarray(b_out, f32).reshape(1, TAGS))

    vmem = pl.BlockSpec(memory_space=pltpu.MemorySpace.VMEM)

    out_pad = pl.pallas_call(
        _lstm_classifier_kernel,
        out_shape=jax.ShapeDtypeStruct((1, OUT_PAD), jnp.float32),
        in_specs=[vmem, vmem, vmem, vmem, vmem, vmem],
        out_specs=vmem,
    )(jnp.asarray(sentence, jnp.int32).reshape(T, 1),
      table_g.astype(jnp.bfloat16),              # MXU operands in bf16,
      whh_g.astype(jnp.bfloat16),                # accumulation & elementwise stay f32
      b_g,
      wout_pad.astype(jnp.bfloat16),
      bout_pad)

    return out_pad[:, :TAGS]                                   # (1, TAGS)


def reference_forward(sentence, emb, w_ih, w_hh, b_ih, b_hh, w_out, b_out):
    """Pure-JAX f32 reference matching torch.nn.LSTM semantics (zero initial state)."""
    H = w_hh.shape[1]
    x = emb[sentence]                                          # (T, E)

    def step(carry, xt):
        h, c = carry
        gates = xt @ w_ih.T + h @ w_hh.T + b_ih + b_hh         # (4H,)
        i_g = jax.nn.sigmoid(gates[0 * H:1 * H])
        f_g = jax.nn.sigmoid(gates[1 * H:2 * H])
        g_g = jnp.tanh(gates[2 * H:3 * H])
        o_g = jax.nn.sigmoid(gates[3 * H:4 * H])
        c = f_g * c + i_g * g_g
        h = o_g * jnp.tanh(c)
        return (h, c), h

    (h, _), _ = lax.scan(step, (jnp.zeros((H,), jnp.float32),
                                jnp.zeros((H,), jnp.float32)), x)
    return (h @ w_out.T + b_out)[None, :]                      # (1, TAGS)


if __name__ == "__main__":
    # Small shapes consistent with the module's forward.
    EMBEDDING_DIM = 16
    HIDDEN_DIM = 32
    VOCAB_SIZE = 50
    TAGSET_SIZE = 5
    SEQ_LEN = 8

    key = jax.random.PRNGKey(0)
    ks = jax.random.split(key, 8)

    # Deterministic parameter init mirroring the module's __init__ / init_emb.
    initrange = 0.5 / EMBEDDING_DIM
    emb = jax.random.uniform(ks[0], (VOCAB_SIZE, EMBEDDING_DIM), jnp.float32,
                             -initrange, initrange)
    lstm_bound = 1.0 / float(HIDDEN_DIM) ** 0.5
    w_ih = jax.random.uniform(ks[1], (4 * HIDDEN_DIM, EMBEDDING_DIM), jnp.float32,
                              -lstm_bound, lstm_bound)
    w_hh = jax.random.uniform(ks[2], (4 * HIDDEN_DIM, HIDDEN_DIM), jnp.float32,
                              -lstm_bound, lstm_bound)
    b_ih = jax.random.uniform(ks[3], (4 * HIDDEN_DIM,), jnp.float32,
                              -lstm_bound, lstm_bound)
    b_hh = jax.random.uniform(ks[4], (4 * HIDDEN_DIM,), jnp.float32,
                              -lstm_bound, lstm_bound)
    lin_bound = 1.0 / float(HIDDEN_DIM) ** 0.5
    w_out = jax.random.uniform(ks[5], (TAGSET_SIZE, HIDDEN_DIM), jnp.float32,
                               -lin_bound, lin_bound)
    b_out = jax.random.uniform(ks[6], (TAGSET_SIZE,), jnp.float32,
                               -lin_bound, lin_bound)

    sentence = jax.random.randint(ks[7], (SEQ_LEN,), 0, VOCAB_SIZE, jnp.int32)

    tag_space = lstm_classifier_forward(sentence, emb, w_ih, w_hh, b_ih, b_hh,
                                        w_out, b_out)
    tag_space = jax.block_until_ready(tag_space)

    ref = reference_forward(sentence, emb, w_ih, w_hh, b_ih, b_hh, w_out, b_out)
    assert tag_space.shape == (1, TAGSET_SIZE)
    # bf16 MXU operands (f32 accumulate) -> relaxed tolerance vs. the f32 reference.
    assert jnp.allclose(tag_space, ref, atol=2e-2, rtol=2e-2), (tag_space, ref)

    print("KERNEL_OK")
</pallas_src>

<mosaic_0001>
module attributes {stable_mosaic.version = 11 : i64} {
  func.func @_lstm_classifier_kernel(%arg0: memref<8x1xi32, #tpu.memory_space<vmem>>, %arg1: memref<128x512xbf16, #tpu.memory_space<vmem>>, %arg2: memref<32x512xbf16, #tpu.memory_space<vmem>>, %arg3: memref<1x512xf32, #tpu.memory_space<vmem>>, %arg4: memref<32x128xbf16, #tpu.memory_space<vmem>>, %arg5: memref<1x128xf32, #tpu.memory_space<vmem>>, %arg6: memref<1x128xf32, #tpu.memory_space<vmem>>) attributes {dimension_semantics = [], scalar_prefetch = 0 : i64, scratch_operands = 0 : i64, tpu.core_type = #tpu.core_type<tc>} {
    %c0 = arith.constant 0 : index
    %c0_0 = arith.constant 0 : index
    %0 = vector.load %arg0[%c0, %c0_0] : memref<8x1xi32, #tpu.memory_space<vmem>>, vector<8x1xi32>
    %1 = tpu.iota {dimensions = array<i32: 1>} : vector<8x128xi32>
    %2 = vector.broadcast %0 : vector<8x1xi32> to vector<8x128xi32>
    %3 = arith.cmpi eq, %1, %2 : vector<8x128xi32>
    %cst = arith.constant 1.000000e+00 : f32
    %cst_1 = arith.constant 0.000000e+00 : f32
    %4 = vector.broadcast %cst : f32 to vector<8x128xf32>
    %5 = vector.broadcast %cst_1 : f32 to vector<8x128xf32>
    %6 = arith.select %3, %4, %5 : vector<8x128xi1>, vector<8x128xf32>
    %7 = arith.truncf %6 : vector<8x128xf32> to vector<8x128xbf16>
    %c0_2 = arith.constant 0 : index
    %c0_3 = arith.constant 0 : index
    %8 = vector.load %arg1[%c0_2, %c0_3] : memref<128x512xbf16, #tpu.memory_space<vmem>>, vector<128x512xbf16>
    %cst_4 = arith.constant dense<0.000000e+00> : vector<8x512xf32>
    %9 = tpu.matmul %7, %8, %cst_4 {dimension_numbers = #tpu.dot_dimension_numbers<[1], [0], [0], [1], [0, 0, 1, 1], [], []>} : vector<8x128xbf16>, vector<128x512xbf16>, vector<8x512xf32> -> vector<8x512xf32>
    %c0_5 = arith.constant 0 : index
    %c0_6 = arith.constant 0 : index
    %10 = vector.load %arg3[%c0_5, %c0_6] : memref<1x512xf32, #tpu.memory_space<vmem>>, vector<1x512xf32>
    %11 = vector.broadcast %10 : vector<1x512xf32> to vector<8x512xf32>
    %12 = arith.addf %9, %11 : vector<8x512xf32>
    %c0_7 = arith.constant 0 : index
    %c0_8 = arith.constant 0 : index
    %13 = vector.load %arg2[%c0_7, %c0_8] : memref<32x512xbf16, #tpu.memory_space<vmem>>, vector<32x512xbf16>
    %cst_9 = arith.constant 0.000000e+00 : f32
    %14 = vector.broadcast %cst_9 : f32 to vector<1x32xf32>
    %cst_10 = arith.constant 0.000000e+00 : f32
    %15 = vector.broadcast %cst_10 : f32 to vector<1x32xf32>
    %16 = vector.extract_strided_slice %12 {offsets = [0, 0], sizes = [1, 512], strides = [1, 1]} : vector<8x512xf32> to vector<1x512xf32>
    %17 = arith.truncf %14 : vector<1x32xf32> to vector<1x32xbf16>
    %cst_11 = arith.constant dense<0.000000e+00> : vector<1x512xf32>
    %18 = tpu.matmul %17, %13, %cst_11 {dimension_numbers = #tpu.dot_dimension_numbers<[1], [0], [0], [1], [0, 0, 1, 1], [], []>} : vector<1x32xbf16>, vector<32x512xbf16>, vector<1x512xf32> -> vector<1x512xf32>
    %19 = arith.addf %16, %18 : vector<1x512xf32>
    %20 = vector.extract_strided_slice %19 {offsets = [0, 0], sizes = [1, 32], strides = [1, 1]} : vector<1x512xf32> to vector<1x32xf32>
    %21 = arith.negf %20 : vector<1x32xf32>
    %22 = math.exp %21 : vector<1x32xf32>
    %cst_12 = arith.constant 1.000000e+00 : f32
    %23 = vector.broadcast %cst_12 : f32 to vector<1x32xf32>
    %24 = arith.addf %23, %22 : vector<1x32xf32>
    %25 = arith.divf %23, %24 : vector<1x32xf32>
    %26 = vector.extract_strided_slice %19 {offsets = [0, 128], sizes = [1, 32], strides = [1, 1]} : vector<1x512xf32> to vector<1x32xf32>
    %27 = arith.negf %26 : vector<1x32xf32>
    %28 = math.exp %27 : vector<1x32xf32>
    %cst_13 = arith.constant 1.000000e+00 : f32
    %29 = vector.broadcast %cst_13 : f32 to vector<1x32xf32>
    %30 = arith.addf %29, %28 : vector<1x32xf32>
    %31 = arith.divf %29, %30 : vector<1x32xf32>
    %32 = vector.extract_strided_slice %19 {offsets = [0, 256], sizes = [1, 32], strides = [1, 1]} : vector<1x512xf32> to vector<1x32xf32>
    %33 = math.tanh %32 : vector<1x32xf32>
    %34 = vector.extract_strided_slice %19 {offsets = [0, 384], sizes = [1, 32], strides = [1, 1]} : vector<1x512xf32> to vector<1x32xf32>
    %35 = arith.negf %34 : vector<1x32xf32>
    %36 = math.exp %35 : vector<1x32xf32>
    %cst_14 = arith.constant 1.000000e+00 : f32
    %37 = vector.broadcast %cst_14 : f32 to vector<1x32xf32>
    %38 = arith.addf %37, %36 : vector<1x32xf32>
    %39 = arith.divf %37, %38 : vector<1x32xf32>
    %40 = arith.mulf %31, %15 : vector<1x32xf32>
    %41 = arith.mulf %25, %33 : vector<1x32xf32>
    %42 = arith.addf %40, %41 : vector<1x32xf32>
    %43 = math.tanh %42 : vector<1x32xf32>
    %44 = arith.mulf %39, %43 : vector<1x32xf32>
    %45 = vector.extract_strided_slice %12 {offsets = [1, 0], sizes = [1, 512], strides = [1, 1]} : vector<8x512xf32> to vector<1x512xf32>
    %46 = arith.truncf %44 : vector<1x32xf32> to vector<1x32xbf16>
    %cst_15 = arith.constant dense<0.000000e+00> : vector<1x512xf32>
    %47 = tpu.matmul %46, %13, %cst_15 {dimension_numbers = #tpu.dot_dimension_numbers<[1], [0], [0], [1], [0, 0, 1, 1], [], []>} : vector<1x32xbf16>, vector<32x512xbf16>, vector<1x512xf32> -> vector<1x512xf32>
    %48 = arith.addf %45, %47 : vector<1x512xf32>
    %49 = vector.extract_strided_slice %48 {offsets = [0, 0], sizes = [1, 32], strides = [1, 1]} : vector<1x512xf32> to vector<1x32xf32>
    %50 = arith.negf %49 : vector<1x32xf32>
    %51 = math.exp %50 : vector<1x32xf32>
    %cst_16 = arith.constant 1.000000e+00 : f32
    %52 = vector.broadcast %cst_16 : f32 to vector<1x32xf32>
    %53 = arith.addf %52, %51 : vector<1x32xf32>
    %54 = arith.divf %52, %53 : vector<1x32xf32>
    %55 = vector.extract_strided_slice %48 {offsets = [0, 128], sizes = [1, 32], strides = [1, 1]} : vector<1x512xf32> to vector<1x32xf32>
    %56 = arith.negf %55 : vector<1x32xf32>
    %57 = math.exp %56 : vector<1x32xf32>
    %cst_17 = arith.constant 1.000000e+00 : f32
    %58 = vector.broadcast %cst_17 : f32 to vector<1x32xf32>
    %59 = arith.addf %58, %57 : vector<1x32xf32>
    %60 = arith.divf %58, %59 : vector<1x32xf32>
    %61 = vector.extract_strided_slice %48 {offsets = [0, 256], sizes = [1, 32], strides = [1, 1]} : vector<1x512xf32> to vector<1x32xf32>
    %62 = math.tanh %61 : vector<1x32xf32>
    %63 = vector.extract_strided_slice %48 {offsets = [0, 384], sizes = [1, 32], strides = [1, 1]} : vector<1x512xf32> to vector<1x32xf32>
    %64 = arith.negf %63 : vector<1x32xf32>
    %65 = math.exp %64 : vector<1x32xf32>
    %cst_18 = arith.constant 1.000000e+00 : f32
    %66 = vector.broadcast %cst_18 : f32 to vector<1x32xf32>
    %67 = arith.addf %66, %65 : vector<1x32xf32>
    %68 = arith.divf %66, %67 : vector<1x32xf32>
    %69 = arith.mulf %60, %42 : vector<1x32xf32>
    %70 = arith.mulf %54, %62 : vector<1x32xf32>
    %71 = arith.addf %69, %70 : vector<1x32xf32>
    %72 = math.tanh %71 : vector<1x32xf32>
    %73 = arith.mulf %68, %72 : vector<1x32xf32>
    %74 = vector.extract_strided_slice %12 {offsets = [2, 0], sizes = [1, 512], strides = [1, 1]} : vector<8x512xf32> to vector<1x512xf32>
    %75 = arith.truncf %73 : vector<1x32xf32> to vector<1x32xbf16>
    %cst_19 = arith.constant dense<0.000000e+00> : vector<1x512xf32>
    %76 = tpu.matmul %75, %13, %cst_19 {dimension_numbers = #tpu.dot_dimension_numbers<[1], [0], [0], [1], [0, 0, 1, 1], [], []>} : vector<1x32xbf16>, vector<32x512xbf16>, vector<1x512xf32> -> vector<1x512xf32>
    %77 = arith.addf %74, %76 : vector<1x512xf32>
    %78 = vector.extract_strided_slice %77 {offsets = [0, 0], sizes = [1, 32], strides = [1, 1]} : vector<1x512xf32> to vector<1x32xf32>
    %79 = arith.negf %78 : vector<1x32xf32>
    %80 = math.exp %79 : vector<1x32xf32>
    %cst_20 = arith.constant 1.000000e+00 : f32
    %81 = vector.broadcast %cst_20 : f32 to vector<1x32xf32>
    %82 = arith.addf %81, %80 : vector<1x32xf32>
    %83 = arith.divf %81, %82 : vector<1x32xf32>
    %84 = vector.extract_strided_slice %77 {offsets = [0, 128], sizes = [1, 32], strides = [1, 1]} : vector<1x512xf32> to vector<1x32xf32>
    %85 = arith.negf %84 : vector<1x32xf32>
    %86 = math.exp %85 : vector<1x32xf32>
    %cst_21 = arith.constant 1.000000e+00 : f32
    %87 = vector.broadcast %cst_21 : f32 to vector<1x32xf32>
    %88 = arith.addf %87, %86 : vector<1x32xf32>
    %89 = arith.divf %87, %88 : vector<1x32xf32>
    %90 = vector.extract_strided_slice %77 {offsets = [0, 256], sizes = [1, 32], strides = [1, 1]} : vector<1x512xf32> to vector<1x32xf32>
    %91 = math.tanh %90 : vector<1x32xf32>
    %92 = vector.extract_strided_slice %77 {offsets = [0, 384], sizes = [1, 32], strides = [1, 1]} : vector<1x512xf32> to vector<1x32xf32>
    %93 = arith.negf %92 : vector<1x32xf32>
    %94 = math.exp %93 : vector<1x32xf32>
    %cst_22 = arith.constant 1.000000e+00 : f32
    %95 = vector.broadcast %cst_22 : f32 to vector<1x32xf32>
    %96 = arith.addf %95, %94 : vector<1x32xf32>
    %97 = arith.divf %95, %96 : vector<1x32xf32>
    %98 = arith.mulf %89, %71 : vector<1x32xf32>
    %99 = arith.mulf %83, %91 : vector<1x32xf32>
    %100 = arith.addf %98, %99 : vector<1x32xf32>
    %101 = math.tanh %100 : vector<1x32xf32>
    %102 = arith.mulf %97, %101 : vector<1x32xf32>
    %103 = vector.extract_strided_slice %12 {offsets = [3, 0], sizes = [1, 512], strides = [1, 1]} : vector<8x512xf32> to vector<1x512xf32>
    %104 = arith.truncf %102 : vector<1x32xf32> to vector<1x32xbf16>
    %cst_23 = arith.constant dense<0.000000e+00> : vector<1x512xf32>
    %105 = tpu.matmul %104, %13, %cst_23 {dimension_numbers = #tpu.dot_dimension_numbers<[1], [0], [0], [1], [0, 0, 1, 1], [], []>} : vector<1x32xbf16>, vector<32x512xbf16>, vector<1x512xf32> -> vector<1x512xf32>
    %106 = arith.addf %103, %105 : vector<1x512xf32>
    %107 = vector.extract_strided_slice %106 {offsets = [0, 0], sizes = [1, 32], strides = [1, 1]} : vector<1x512xf32> to vector<1x32xf32>
    %108 = arith.negf %107 : vector<1x32xf32>
    %109 = math.exp %108 : vector<1x32xf32>
    %cst_24 = arith.constant 1.000000e+00 : f32
    %110 = vector.broadcast %cst_24 : f32 to vector<1x32xf32>
    %111 = arith.addf %110, %109 : vector<1x32xf32>
    %112 = arith.divf %110, %111 : vector<1x32xf32>
    %113 = vector.extract_strided_slice %106 {offsets = [0, 128], sizes = [1, 32], strides = [1, 1]} : vector<1x512xf32> to vector<1x32xf32>
    %114 = arith.negf %113 : vector<1x32xf32>
    %115 = math.exp %114 : vector<1x32xf32>
    %cst_25 = arith.constant 1.000000e+00 : f32
    %116 = vector.broadcast %cst_25 : f32 to vector<1x32xf32>
    %117 = arith.addf %116, %115 : vector<1x32xf32>
    %118 = arith.divf %116, %117 : vector<1x32xf32>
    %119 = vector.extract_strided_slice %106 {offsets = [0, 256], sizes = [1, 32], strides = [1, 1]} : vector<1x512xf32> to vector<1x32xf32>
    %120 = math.tanh %119 : vector<1x32xf32>
    %121 = vector.extract_strided_slice %106 {offsets = [0, 384], sizes = [1, 32], strides = [1, 1]} : vector<1x512xf32> to vector<1x32xf32>
    %122 = arith.negf %121 : vector<1x32xf32>
    %123 = math.exp %122 : vector<1x32xf32>
    %cst_26 = arith.constant 1.000000e+00 : f32
    %124 = vector.broadcast %cst_26 : f32 to vector<1x32xf32>
    %125 = arith.addf %124, %123 : vector<1x32xf32>
    %126 = arith.divf %124, %125 : vector<1x32xf32>
    %127 = arith.mulf %118, %100 : vector<1x32xf32>
    %128 = arith.mulf %112, %120 : vector<1x32xf32>
    %129 = arith.addf %127, %128 : vector<1x32xf32>
    %130 = math.tanh %129 : vector<1x32xf32>
    %131 = arith.mulf %126, %130 : vector<1x32xf32>
    %132 = vector.extract_strided_slice %12 {offsets = [4, 0], sizes = [1, 512], strides = [1, 1]} : vector<8x512xf32> to vector<1x512xf32>
    %133 = arith.truncf %131 : vector<1x32xf32> to vector<1x32xbf16>
    %cst_27 = arith.constant dense<0.000000e+00> : vector<1x512xf32>
    %134 = tpu.matmul %133, %13, %cst_27 {dimension_numbers = #tpu.dot_dimension_numbers<[1], [0], [0], [1], [0, 0, 1, 1], [], []>} : vector<1x32xbf16>, vector<32x512xbf16>, vector<1x512xf32> -> vector<1x512xf32>
    %135 = arith.addf %132, %134 : vector<1x512xf32>
    %136 = vector.extract_strided_slice %135 {offsets = [0, 0], sizes = [1, 32], strides = [1, 1]} : vector<1x512xf32> to vector<1x32xf32>
    %137 = arith.negf %136 : vector<1x32xf32>
    %138 = math.exp %137 : vector<1x32xf32>
    %cst_28 = arith.constant 1.000000e+00 : f32
    %139 = vector.broadcast %cst_28 : f32 to vector<1x32xf32>
    %140 = arith.addf %139, %138 : vector<1x32xf32>
    %141 = arith.divf %139, %140 : vector<1x32xf32>
    %142 = vector.extract_strided_slice %135 {offsets = [0, 128], sizes = [1, 32], strides = [1, 1]} : vector<1x512xf32> to vector<1x32xf32>
    %143 = arith.negf %142 : vector<1x32xf32>
    %144 = math.exp %143 : vector<1x32xf32>
    %cst_29 = arith.constant 1.000000e+00 : f32
    %145 = vector.broadcast %cst_29 : f32 to vector<1x32xf32>
    %146 = arith.addf %145, %144 : vector<1x32xf32>
    %147 = arith.divf %145, %146 : vector<1x32xf32>
    %148 = vector.extract_strided_slice %135 {offsets = [0, 256], sizes = [1, 32], strides = [1, 1]} : vector<1x512xf32> to vector<1x32xf32>
    %149 = math.tanh %148 : vector<1x32xf32>
    %150 = vector.extract_strided_slice %135 {offsets = [0, 384], sizes = [1, 32], strides = [1, 1]} : vector<1x512xf32> to vector<1x32xf32>
    %151 = arith.negf %150 : vector<1x32xf32>
    %152 = math.exp %151 : vector<1x32xf32>
    %cst_30 = arith.constant 1.000000e+00 : f32
    %153 = vector.broadcast %cst_30 : f32 to vector<1x32xf32>
    %154 = arith.addf %153, %152 : vector<1x32xf32>
    %155 = arith.divf %153, %154 : vector<1x32xf32>
    %156 = arith.mulf %147, %129 : vector<1x32xf32>
    %157 = arith.mulf %141, %149 : vector<1x32xf32>
    %158 = arith.addf %156, %157 : vector<1x32xf32>
    %159 = math.tanh %158 : vector<1x32xf32>
    %160 = arith.mulf %155, %159 : vector<1x32xf32>
    %161 = vector.extract_strided_slice %12 {offsets = [5, 0], sizes = [1, 512], strides = [1, 1]} : vector<8x512xf32> to vector<1x512xf32>
    %162 = arith.truncf %160 : vector<1x32xf32> to vector<1x32xbf16>
    %cst_31 = arith.constant dense<0.000000e+00> : vector<1x512xf32>
    %163 = tpu.matmul %162, %13, %cst_31 {dimension_numbers = #tpu.dot_dimension_numbers<[1], [0], [0], [1], [0, 0, 1, 1], [], []>} : vector<1x32xbf16>, vector<32x512xbf16>, vector<1x512xf32> -> vector<1x512xf32>
    %164 = arith.addf %161, %163 : vector<1x512xf32>
    %165 = vector.extract_strided_slice %164 {offsets = [0, 0], sizes = [1, 32], strides = [1, 1]} : vector<1x512xf32> to vector<1x32xf32>
    %166 = arith.negf %165 : vector<1x32xf32>
    %167 = math.exp %166 : vector<1x32xf32>
    %cst_32 = arith.constant 1.000000e+00 : f32
    %168 = vector.broadcast %cst_32 : f32 to vector<1x32xf32>
    %169 = arith.addf %168, %167 : vector<1x32xf32>
    %170 = arith.divf %168, %169 : vector<1x32xf32>
    %171 = vector.extract_strided_slice %164 {offsets = [0, 128], sizes = [1, 32], strides = [1, 1]} : vector<1x512xf32> to vector<1x32xf32>
    %172 = arith.negf %171 : vector<1x32xf32>
    %173 = math.exp %172 : vector<1x32xf32>
    %cst_33 = arith.constant 1.000000e+00 : f32
    %174 = vector.broadcast %cst_33 : f32 to vector<1x32xf32>
    %175 = arith.addf %174, %173 : vector<1x32xf32>
    %176 = arith.divf %174, %175 : vector<1x32xf32>
    %177 = vector.extract_strided_slice %164 {offsets = [0, 256], sizes = [1, 32], strides = [1, 1]} : vector<1x512xf32> to vector<1x32xf32>
    %178 = math.tanh %177 : vector<1x32xf32>
    %179 = vector.extract_strided_slice %164 {offsets = [0, 384], sizes = [1, 32], strides = [1, 1]} : vector<1x512xf32> to vector<1x32xf32>
    %180 = arith.negf %179 : vector<1x32xf32>
    %181 = math.exp %180 : vector<1x32xf32>
    %cst_34 = arith.constant 1.000000e+00 : f32
    %182 = vector.broadcast %cst_34 : f32 to vector<1x32xf32>
    %183 = arith.addf %182, %181 : vector<1x32xf32>
    %184 = arith.divf %182, %183 : vector<1x32xf32>
    %185 = arith.mulf %176, %158 : vector<1x32xf32>
    %186 = arith.mulf %170, %178 : vector<1x32xf32>
    %187 = arith.addf %185, %186 : vector<1x32xf32>
    %188 = math.tanh %187 : vector<1x32xf32>
    %189 = arith.mulf %184, %188 : vector<1x32xf32>
    %190 = vector.extract_strided_slice %12 {offsets = [6, 0], sizes = [1, 512], strides = [1, 1]} : vector<8x512xf32> to vector<1x512xf32>
    %191 = arith.truncf %189 : vector<1x32xf32> to vector<1x32xbf16>
    %cst_35 = arith.constant dense<0.000000e+00> : vector<1x512xf32>
    %192 = tpu.matmul %191, %13, %cst_35 {dimension_numbers = #tpu.dot_dimension_numbers<[1], [0], [0], [1], [0, 0, 1, 1], [], []>} : vector<1x32xbf16>, vector<32x512xbf16>, vector<1x512xf32> -> vector<1x512xf32>
    %193 = arith.addf %190, %192 : vector<1x512xf32>
    %194 = vector.extract_strided_slice %193 {offsets = [0, 0], sizes = [1, 32], strides = [1, 1]} : vector<1x512xf32> to vector<1x32xf32>
    %195 = arith.negf %194 : vector<1x32xf32>
    %196 = math.exp %195 : vector<1x32xf32>
    %cst_36 = arith.constant 1.000000e+00 : f32
    %197 = vector.broadcast %cst_36 : f32 to vector<1x32xf32>
    %198 = arith.addf %197, %196 : vector<1x32xf32>
    %199 = arith.divf %197, %198 : vector<1x32xf32>
    %200 = vector.extract_strided_slice %193 {offsets = [0, 128], sizes = [1, 32], strides = [1, 1]} : vector<1x512xf32> to vector<1x32xf32>
    %201 = arith.negf %200 : vector<1x32xf32>
    %202 = math.exp %201 : vector<1x32xf32>
    %cst_37 = arith.constant 1.000000e+00 : f32
    %203 = vector.broadcast %cst_37 : f32 to vector<1x32xf32>
    %204 = arith.addf %203, %202 : vector<1x32xf32>
    %205 = arith.divf %203, %204 : vector<1x32xf32>
    %206 = vector.extract_strided_slice %193 {offsets = [0, 256], sizes = [1, 32], strides = [1, 1]} : vector<1x512xf32> to vector<1x32xf32>
    %207 = math.tanh %206 : vector<1x32xf32>
    %208 = vector.extract_strided_slice %193 {offsets = [0, 384], sizes = [1, 32], strides = [1, 1]} : vector<1x512xf32> to vector<1x32xf32>
    %209 = arith.negf %208 : vector<1x32xf32>
    %210 = math.exp %209 : vector<1x32xf32>
    %cst_38 = arith.constant 1.000000e+00 : f32
    %211 = vector.broadcast %cst_38 : f32 to vector<1x32xf32>
    %212 = arith.addf %211, %210 : vector<1x32xf32>
    %213 = arith.divf %211, %212 : vector<1x32xf32>
    %214 = arith.mulf %205, %187 : vector<1x32xf32>
    %215 = arith.mulf %199, %207 : vector<1x32xf32>
    %216 = arith.addf %214, %215 : vector<1x32xf32>
    %217 = math.tanh %216 : vector<1x32xf32>
    %218 = arith.mulf %213, %217 : vector<1x32xf32>
    %219 = vector.extract_strided_slice %12 {offsets = [7, 0], sizes = [1, 512], strides = [1, 1]} : vector<8x512xf32> to vector<1x512xf32>
    %220 = arith.truncf %218 : vector<1x32xf32> to vector<1x32xbf16>
    %cst_39 = arith.constant dense<0.000000e+00> : vector<1x512xf32>
    %221 = tpu.matmul %220, %13, %cst_39 {dimension_numbers = #tpu.dot_dimension_numbers<[1], [0], [0], [1], [0, 0, 1, 1], [], []>} : vector<1x32xbf16>, vector<32x512xbf16>, vector<1x512xf32> -> vector<1x512xf32>
    %222 = arith.addf %219, %221 : vector<1x512xf32>
    %223 = vector.extract_strided_slice %222 {offsets = [0, 0], sizes = [1, 32], strides = [1, 1]} : vector<1x512xf32> to vector<1x32xf32>
    %224 = arith.negf %223 : vector<1x32xf32>
    %225 = math.exp %224 : vector<1x32xf32>
    %cst_40 = arith.constant 1.000000e+00 : f32
    %226 = vector.broadcast %cst_40 : f32 to vector<1x32xf32>
    %227 = arith.addf %226, %225 : vector<1x32xf32>
    %228 = arith.divf %226, %227 : vector<1x32xf32>
    %229 = vector.extract_strided_slice %222 {offsets = [0, 128], sizes = [1, 32], strides = [1, 1]} : vector<1x512xf32> to vector<1x32xf32>
    %230 = arith.negf %229 : vector<1x32xf32>
    %231 = math.exp %230 : vector<1x32xf32>
    %cst_41 = arith.constant 1.000000e+00 : f32
    %232 = vector.broadcast %cst_41 : f32 to vector<1x32xf32>
    %233 = arith.addf %232, %231 : vector<1x32xf32>
    %234 = arith.divf %232, %233 : vector<1x32xf32>
    %235 = vector.extract_strided_slice %222 {offsets = [0, 256], sizes = [1, 32], strides = [1, 1]} : vector<1x512xf32> to vector<1x32xf32>
    %236 = math.tanh %235 : vector<1x32xf32>
    %237 = vector.extract_strided_slice %222 {offsets = [0, 384], sizes = [1, 32], strides = [1, 1]} : vector<1x512xf32> to vector<1x32xf32>
    %238 = arith.negf %237 : vector<1x32xf32>
    %239 = math.exp %238 : vector<1x32xf32>
    %cst_42 = arith.constant 1.000000e+00 : f32
    %240 = vector.broadcast %cst_42 : f32 to vector<1x32xf32>
    %241 = arith.addf %240, %239 : vector<1x32xf32>
    %242 = arith.divf %240, %241 : vector<1x32xf32>
    %243 = arith.mulf %234, %216 : vector<1x32xf32>
    %244 = arith.mulf %228, %236 : vector<1x32xf32>
    %245 = arith.addf %243, %244 : vector<1x32xf32>
    %246 = math.tanh %245 : vector<1x32xf32>
    %247 = arith.mulf %242, %246 : vector<1x32xf32>
    %248 = arith.truncf %247 : vector<1x32xf32> to vector<1x32xbf16>
    %c0_43 = arith.constant 0 : index
    %c0_44 = arith.constant 0 : index
    %249 = vector.load %arg4[%c0_43, %c0_44] : memref<32x128xbf16, #tpu.memory_space<vmem>>, vector<32x128xbf16>
    %cst_45 = arith.constant dense<0.000000e+00> : vector<1x128xf32>
    %250 = tpu.matmul %248, %249, %cst_45 {dimension_numbers = #tpu.dot_dimension_numbers<[1], [0], [0], [1], [0, 0, 1, 1], [], []>} : vector<1x32xbf16>, vector<32x128xbf16>, vector<1x128xf32> -> vector<1x128xf32>
    %c0_46 = arith.constant 0 : index
    %c0_47 = arith.constant 0 : index
    %251 = vector.load %arg5[%c0_46, %c0_47] : memref<1x128xf32, #tpu.memory_space<vmem>>, vector<1x128xf32>
    %252 = arith.addf %250, %251 : vector<1x128xf32>
    %c0_48 = arith.constant 0 : index
    %c0_49 = arith.constant 0 : index
    %253 = vector.load %arg6[%c0_48, %c0_49] : memref<1x128xf32, #tpu.memory_space<vmem>>, vector<1x128xf32>
    tpu.vector_store %arg6[%c0_48, %c0_49], %252 {strides = array<i32>} : memref<1x128xf32, #tpu.memory_space<vmem>>, vector<1x128xf32>,
    return
  }
}

</mosaic_0001>

<llo_original>
// kernel: tpu_custom_call.1
$region0: #{tpu_custom_call.1}
  #allocation0 [shape = 'u32[]', space=smem, size = 0x4, offset = 0x4, fixed_abs, tag = 'smem constant byte address 0x4 - core index']
  #allocation1 [shape = 'u32[144,128]{1,0:T(1,128)}', space=vmem, size = 0x12000, scoped, tag = 'internal scratch']
  %s0 = inlined_call_operand.vmem [shape: s32[8,1], index: 0, kind: input, shape index: {}]
  %s1 = inlined_call_operand.hbm [shape: bf16[128,512], index: 1, kind: input, shape index: {}]
  %s2 = inlined_call_operand.hbm [shape: bf16[32,512], index: 2, kind: input, shape index: {}]
  %s3 = inlined_call_operand.hbm [shape: f32[1,512], index: 3, kind: input, shape index: {}]
  %s4 = inlined_call_operand.vmem [shape: bf16[32,128], index: 4, kind: input, shape index: {}]
  %s5 = inlined_call_operand.vmem [shape: f32[1,128], index: 5, kind: input, shape index: {}]
  %s6 = inlined_call_operand.hbm [shape: f32[1,128], index: 6, kind: output, shape index: {}]
  %s7 = sld [smem:[#allocation0]]
  $region46: #{tpu_custom_call.1} parent=0
    _
  %s9 = ssub.s32 1, %s7
  %s10 = scalar_select 0, %s9, %s7
  $region1: #{tpu_custom_call.1} parent=0
    #allocation2 [shape = 'u8[131072]{0}', space=vmem, size = 0x20000, scoped, tag = 'input window, operand 1, single buffered']
    #allocation3 [shape = 's32[1]{0}', space=sflag, size = 0x4, scoped, tag = 'scoped memory for tpu_custom_call.1']
    #allocation4 [shape = 's32[1]{0}', space=sflag, size = 0x4, scoped, tag = 'scoped memory for tpu_custom_call.1']
    #allocation5 [shape = 'u8[32768]{0}', space=vmem, size = 0x8000, scoped, tag = 'input window, operand 2, single buffered']
    #allocation6 [shape = 's32[1]{0}', space=sflag, size = 0x4, scoped, tag = 'scoped memory for tpu_custom_call.1']
    #allocation7 [shape = 'u8[2048]{0}', space=vmem, size = 0x800, scoped, tag = 'input window, operand 3, single buffered']
    #allocation8 [shape = 'u8[512]{0}', space=vmem, size = 0x400, scoped, tag = 'output window, operand 0, single buffered']
    %11 = vsyncpa [#allocation3], 0
    %12 = vsyncpa [#allocation6], 0
    %13 = vsyncpa [#allocation4], 0
    // Predicated region
    $region2: #{tpu_custom_call.1} parent=1 // pred_check
      _
    $region3: #{tpu_custom_call.1} parent=1 // pred_check_branch
      %15 = sbr.rel (0) target = $region5
    $region4: #{tpu_custom_call.1} parent=1 // pred_region
      _
    $region5: #{tpu_custom_call.1} parent=1 // pred_fallthru
      _
    // Predicated region
    $region6: #{tpu_custom_call.1} parent=1 // pred_check
      _
    $region7: #{tpu_custom_call.1} parent=1 // pred_check_branch
      %17 = sbr.rel (0) target = $region9
    $region8: #{tpu_custom_call.1} parent=1 // pred_region
      %s19 = ssub.s32 4096, 4096
      %20 = vsyncadd [#allocation3], %s19
      %s21 = sshll.u32 [#allocation2], 4
      %s22 = int_to_ptr.vmem [resolvable:$true] %s21
      %27 = dma.hbm_to_vmem [thread:$0]  %s1, 4096, %s22, [#allocation3], 256, 256, 16
    $region9: #{tpu_custom_call.1} parent=1 // pred_fallthru
      _
    // Predicated region
    $region10: #{tpu_custom_call.1} parent=1 // pred_check
      _
    $region11: #{tpu_custom_call.1} parent=1 // pred_check_branch
      %29 = sbr.rel (0) target = $region13
    $region12: #{tpu_custom_call.1} parent=1 // pred_region
      %s31 = ssub.s32 1024, 1024
      %32 = vsyncadd [#allocation6], %s31
      %s33 = sshll.u32 [#allocation5], 4
      %s34 = int_to_ptr.vmem [resolvable:$true] %s33
      %39 = dma.hbm_to_vmem [thread:$0]  %s2, 1024, %s34, [#allocation6], 256, 256, 16
    $region13: #{tpu_custom_call.1} parent=1 // pred_fallthru
      _
    // Predicated region
    $region14: #{tpu_custom_call.1} parent=1 // pred_check
      _
    $region15: #{tpu_custom_call.1} parent=1 // pred_check_branch
      %41 = sbr.rel (0) target = $region17
    $region16: #{tpu_custom_call.1} parent=1 // pred_region
      %s43 = ssub.s32 64, 64
      %44 = vsyncadd [#allocation6], %s43
      %s46 = sshll.u32 [#allocation7], 4
      %s47 = int_to_ptr.vmem [resolvable:$true] %s46
      %49 = dma.hbm_to_vmem [thread:$0]  %s3, 64, %s47, [#allocation6]
    $region17: #{tpu_custom_call.1} parent=1 // pred_fallthru
      _
    // Predicated region
    $region18: #{tpu_custom_call.1} parent=1 // pred_check
      _
    $region19: #{tpu_custom_call.1} parent=1 // pred_check_branch
      %51 = sbr.rel (0) target = $region21
    $region20: #{tpu_custom_call.1} parent=1 // pred_region
      _
    $region21: #{tpu_custom_call.1} parent=1 // pred_fallthru
      _
    // Predicated region
    $region22: #{tpu_custom_call.1} parent=1 // pred_check
      _
    $region23: #{tpu_custom_call.1} parent=1 // pred_check_branch
      %53 = sbr.rel (0) target = $region25
    $region24: #{tpu_custom_call.1} parent=1 // pred_region
      _
    $region25: #{tpu_custom_call.1} parent=1 // pred_fallthru
      _
    // Predicated region
    $region26: #{tpu_custom_call.1} parent=1 // pred_check
      _
    $region27: #{tpu_custom_call.1} parent=1 // pred_check_branch
      %55 = sbr.rel (0) target = $region29
    $region28: #{tpu_custom_call.1} parent=1 // pred_region
      %56 = dma.done [#allocation3], 4096
    $region29: #{tpu_custom_call.1} parent=1 // pred_fallthru
      _
    // Predicated region
    $region30: #{tpu_custom_call.1} parent=1 // pred_check
      _
    $region31: #{tpu_custom_call.1} parent=1 // pred_check_branch
      %58 = sbr.rel (0) target = $region33
    $region32: #{tpu_custom_call.1} parent=1 // pred_region
      %59 = dma.done [#allocation6], 1024
    $region33: #{tpu_custom_call.1} parent=1 // pred_fallthru
      _
    // Predicated region
    $region34: #{tpu_custom_call.1} parent=1 // pred_check
      _
    $region35: #{tpu_custom_call.1} parent=1 // pred_check_branch
      %61 = sbr.rel (0) target = $region37
    $region36: #{tpu_custom_call.1} parent=1 // pred_region
      %62 = dma.done [#allocation6], 64
    $region37: #{tpu_custom_call.1} parent=1 // pred_fallthru
      _
    %v64 = vld [vmem:[%s0] sm:$0xff]
    %v65 = vlaneseq
    %v66 = vand.u32 %v65, 127
    %67 = vset.pattern.permute.xlu0 0
    %68 = vperm.xlu0 %67, %v64
    %v69 = vpop.permute.xlu0 %68
    %vm70 = vcmp.eq.s32.totalorder %v66, %v69
    %v71 = vsel %vm70, 1.0, 0.0
    %v72 = vpack.c.bf16 %v71, %v71
    %v73 = vld [vmem:[#allocation2] sm:$0xff]
    %v74 = vld [vmem:[#allocation2 + $0x8] sm:$0xff]
    %v75 = vld [vmem:[#allocation2 + $0x10] sm:$0xff]
    %v76 = vld [vmem:[#allocation2 + $0x18] sm:$0xff]
    %v77 = vld [vmem:[#allocation2 + $0x20] sm:$0xff]
    %v78 = vld [vmem:[#allocation2 + $0x28] sm:$0xff]
    %v79 = vld [vmem:[#allocation2 + $0x30] sm:$0xff]
    %v80 = vld [vmem:[#allocation2 + $0x38] sm:$0xff]
    %v81 = vld [vmem:[#allocation2 + $0x40] sm:$0xff]
    %v82 = vld [vmem:[#allocation2 + $0x48] sm:$0xff]
    %v83 = vld [vmem:[#allocation2 + $0x50] sm:$0xff]
    %v84 = vld [vmem:[#allocation2 + $0x58] sm:$0xff]
    %v85 = vld [vmem:[#allocation2 + $0x60] sm:$0xff]
    %v86 = vld [vmem:[#allocation2 + $0x68] sm:$0xff]
    %v87 = vld [vmem:[#allocation2 + $0x70] sm:$0xff]
    %v88 = vld [vmem:[#allocation2 + $0x78] sm:$0xff]
    %v89 = vld [vmem:[#allocation2 + $0x80] sm:$0xff]
    %v90 = vld [vmem:[#allocation2 + $0x88] sm:$0xff]
    %v91 = vld [vmem:[#allocation2 + $0x90] sm:$0xff]
    %v92 = vld [vmem:[#allocation2 + $0x98] sm:$0xff]
    %v93 = vld [vmem:[#allocation2 + $0xa0] sm:$0xff]
    %v94 = vld [vmem:[#allocation2 + $0xa8] sm:$0xff]
    %v95 = vld [vmem:[#allocation2 + $0xb0] sm:$0xff]
    %v96 = vld [vmem:[#allocation2 + $0xb8] sm:$0xff]
    %v97 = vld [vmem:[#allocation2 + $0xc0] sm:$0xff]
    %v98 = vld [vmem:[#allocation2 + $0xc8] sm:$0xff]
    %v99 = vld [vmem:[#allocation2 + $0xd0] sm:$0xff]
    %v100 = vld [vmem:[#allocation2 + $0xd8] sm:$0xff]
    %v101 = vld [vmem:[#allocation2 + $0xe0] sm:$0xff]
    %v102 = vld [vmem:[#allocation2 + $0xe8] sm:$0xff]
    %v103 = vld [vmem:[#allocation2 + $0xf0] sm:$0xff]
    %v104 = vld [vmem:[#allocation2 + $0xf8] sm:$0xff]
    %v105 = vld [vmem:[#allocation7] sm:$0xf]
    %v107 = vlaneseq
    %v108 = vshrl.u32 %v107, 7
    %v109 = vsub.s32 0, %v108
    %v110 = vrot.slane %v105, %v109
    %v111 = vlaneseq
    %v112 = vshrl.u32 %v111, 7
    %v113 = vsub.s32 1, %v112
    %v114 = vrot.slane %v105, %v113
    %v115 = vlaneseq
    %v116 = vshrl.u32 %v115, 7
    %v117 = vsub.s32 2, %v116
    %v118 = vrot.slane %v105, %v117
    %v119 = vlaneseq
    %v120 = vshrl.u32 %v119, 7
    %v121 = vsub.s32 3, %v120
    %v122 = vrot.slane %v105, %v121
    %v159 = vunpack.c.l.b16 %v73
    %v160 = vunpack.c.h.b16 %v73
    %v161 = vunpack.c.l.b16 %v74
    %v162 = vunpack.c.h.b16 %v74
    %v163 = vunpack.c.l.b16 %v75
    %v164 = vunpack.c.h.b16 %v75
    %v165 = vunpack.c.l.b16 %v76
    %v166 = vunpack.c.h.b16 %v76
    %v167 = vunpack.c.l.b16 %v77
    %v168 = vunpack.c.h.b16 %v77
    %v169 = vunpack.c.l.b16 %v78
    %v170 = vunpack.c.h.b16 %v78
    %v171 = vunpack.c.l.b16 %v79
    %v172 = vunpack.c.h.b16 %v79
    %v173 = vunpack.c.l.b16 %v80
    %v174 = vunpack.c.h.b16 %v80
    %v175 = vunpack.c.l.b16 %v81
    %v176 = vunpack.c.h.b16 %v81
    %v177 = vunpack.c.l.b16 %v82
    %v178 = vunpack.c.h.b16 %v82
    %v179 = vunpack.c.l.b16 %v83
    %v180 = vunpack.c.h.b16 %v83
    %v181 = vunpack.c.l.b16 %v84
    %v182 = vunpack.c.h.b16 %v84
    %v183 = vunpack.c.l.b16 %v85
    %v184 = vunpack.c.h.b16 %v85
    %v185 = vunpack.c.l.b16 %v86
    %v186 = vunpack.c.h.b16 %v86
    %v187 = vunpack.c.l.b16 %v87
    %v188 = vunpack.c.h.b16 %v87
    %v189 = vunpack.c.l.b16 %v88
    %v190 = vunpack.c.h.b16 %v88
    %v191 = vunpack.c.l.b16 %v89
    %v192 = vunpack.c.h.b16 %v89
    %v193 = vunpack.c.l.b16 %v90
    %v194 = vunpack.c.h.b16 %v90
    %v195 = vunpack.c.l.b16 %v91
    %v196 = vunpack.c.h.b16 %v91
    %v197 = vunpack.c.l.b16 %v92
    %v198 = vunpack.c.h.b16 %v92
    %v199 = vunpack.c.l.b16 %v93
    %v200 = vunpack.c.h.b16 %v93
    %v201 = vunpack.c.l.b16 %v94
    %v202 = vunpack.c.h.b16 %v94
    %v203 = vunpack.c.l.b16 %v95
    %v204 = vunpack.c.h.b16 %v95
    %v205 = vunpack.c.l.b16 %v96
    %v206 = vunpack.c.h.b16 %v96
    %v207 = vunpack.c.l.b16 %v97
    %v208 = vunpack.c.h.b16 %v97
    %v209 = vunpack.c.l.b16 %v98
    %v210 = vunpack.c.h.b16 %v98
    %v211 = vunpack.c.l.b16 %v99
    %v212 = vunpack.c.h.b16 %v99
    %v213 = vunpack.c.l.b16 %v100
    %v214 = vunpack.c.h.b16 %v100
    %v215 = vunpack.c.l.b16 %v101
    %v216 = vunpack.c.h.b16 %v101
    %v217 = vunpack.c.l.b16 %v102
    %v218 = vunpack.c.h.b16 %v102
    %v219 = vunpack.c.l.b16 %v103
    %v220 = vunpack.c.h.b16 %v103
    %v221 = vunpack.c.l.b16 %v104
    %v222 = vunpack.c.h.b16 %v104
    %v223 = vpack.c.b16 %v163, %v159
    %v224 = vpack.c.b16 %v164, %v160
    %v225 = vpack.c.b16 %v165, %v161
    %v226 = vpack.c.b16 %v166, %v162
    %v227 = vpack.c.b16 %v171, %v167
    %v228 = vpack.c.b16 %v172, %v168
    %v229 = vpack.c.b16 %v173, %v169
    %v230 = vpack.c.b16 %v174, %v170
    %v231 = vpack.c.b16 %v179, %v175
    %v232 = vpack.c.b16 %v180, %v176
    %v233 = vpack.c.b16 %v181, %v177
    %v234 = vpack.c.b16 %v182, %v178
    %v235 = vpack.c.b16 %v187, %v183
    %v236 = vpack.c.b16 %v188, %v184
    %v237 = vpack.c.b16 %v189, %v185
    %v238 = vpack.c.b16 %v190, %v186
    %v239 = vpack.c.b16 %v195, %v191
    %v240 = vpack.c.b16 %v196, %v192
    %v241 = vpack.c.b16 %v197, %v193
    %v242 = vpack.c.b16 %v198, %v194
    %v243 = vpack.c.b16 %v203, %v199
    %v244 = vpack.c.b16 %v204, %v200
    %v245 = vpack.c.b16 %v205, %v201
    %v246 = vpack.c.b16 %v206, %v202
    %v247 = vpack.c.b16 %v211, %v207
    %v248 = vpack.c.b16 %v212, %v208
    %v249 = vpack.c.b16 %v213, %v209
    %v250 = vpack.c.b16 %v214, %v210
    %v251 = vpack.c.b16 %v219, %v215
    %v252 = vpack.c.b16 %v220, %v216
    %v253 = vpack.c.b16 %v221, %v217
    %v254 = vpack.c.b16 %v222, %v218
    %287 = vmatprep.subr.bf16.mxu0 %v252
    %288 = vmatpush1.bf16.msra.mxu0 %v251
    %289 = vmatprep.subr.bf16.mxu0 %v248
    %290 = vmatpush1.bf16.msra.mxu0 %v247
    %291 = vmatprep.subr.bf16.mxu0 %v244
    %292 = vmatpush1.bf16.msra.mxu0 %v243
    %293 = vmatprep.subr.bf16.mxu0 %v240
    %294 = vmatpush1.bf16.msra.mxu0 %v239
    %295 = vmatprep.subr.bf16.mxu0 %v236
    %296 = vmatpush1.bf16.msra.mxu0 %v235
    %297 = vmatprep.subr.bf16.mxu0 %v232
    %298 = vmatpush1.bf16.msra.mxu0 %v231
    %299 = vmatprep.subr.bf16.mxu0 %v228
    %300 = vmatpush1.bf16.msra.mxu0 %v227
    %301 = vmatprep.subr.bf16.mxu0 %v224
    %302 = vmatpush1.bf16.msra.mxu0 %v223
    %303 = vmatprep.subr.bf16.mxu0 0
    %304 = vmatpush2.bf16.msra.mxu0 0
    %305 = vmatprep.subr.bf16.mxu0 0
    %306 = vmatpush2.bf16.msra.mxu0 0
    %307 = vmatprep.subr.bf16.mxu0 0
    %308 = vmatpush2.bf16.msra.mxu0 0
    %309 = vmatprep.subr.bf16.mxu0 0
    %310 = vmatpush2.bf16.msra.mxu0 0
    %311 = vmatprep.subr.bf16.mxu0 0
    %312 = vmatpush2.bf16.msra.mxu0 0
    %313 = vmatprep.subr.bf16.mxu0 0
    %314 = vmatpush2.bf16.msra.mxu0 0
    %315 = vmatprep.subr.bf16.mxu0 0
    %316 = vmatpush2.bf16.msra.mxu0 0
    %317 = vmatprep.subr.bf16.mxu0 0
    %318 = vmatpush2.bf16.msra.mxu0 0
    %319 = vmatprep.mubr.bf16.mxu0 0
    %320 = vmatmul.mubr.bf16.gmra.mxu0 %v72
    %v321 = vpop.f32.mrf.mxu0
    %v322 = vadd.f32 %v110, %v321
    %v323 = vpop.f32.mrf.mxu0
    %v324 = vadd.f32 %v114, %v323
    %v325 = vpop.f32.mrf.mxu0
    %v326 = vpop.f32.mrf.mxu0
    %327 = vdwg.mxu0
    %328 = vmatprep.subr.bf16.mxu0 %v254
    %329 = vmatpush1.bf16.msra.mxu0 %v253
    %330 = vmatprep.subr.bf16.mxu0 %v250
    %331 = vmatpush1.bf16.msra.mxu0 %v249
    %332 = vmatprep.subr.bf16.mxu0 %v246
    %333 = vmatpush1.bf16.msra.mxu0 %v245
    %334 = vmatprep.subr.bf16.mxu0 %v242
    %335 = vmatpush1.bf16.msra.mxu0 %v241
    %336 = vmatprep.subr.bf16.mxu0 %v238
    %337 = vmatpush1.bf16.msra.mxu0 %v237
    %338 = vmatprep.subr.bf16.mxu0 %v234
    %339 = vmatpush1.bf16.msra.mxu0 %v233
    %340 = vmatprep.subr.bf16.mxu0 %v230
    %341 = vmatpush1.bf16.msra.mxu0 %v229
    %342 = vmatprep.subr.bf16.mxu0 %v226
    %343 = vmatpush1.bf16.msra.mxu0 %v225
    %344 = vmatprep.subr.bf16.mxu0 0
    %345 = vmatpush2.bf16.msra.mxu0 0
    %346 = vmatprep.subr.bf16.mxu0 0
    %347 = vmatpush2.bf16.msra.mxu0 0
    %348 = vmatprep.subr.bf16.mxu0 0
    %349 = vmatpush2.bf16.msra.mxu0 0
    %350 = vmatprep.subr.bf16.mxu0 0
    %351 = vmatpush2.bf16.msra.mxu0 0
    %352 = vmatprep.subr.bf16.mxu0 0
    %353 = vmatpush2.bf16.msra.mxu0 0
    %354 = vmatprep.subr.bf16.mxu0 0
    %355 = vmatpush2.bf16.msra.mxu0 0
    %356 = vmatprep.subr.bf16.mxu0 0
    %357 = vmatpush2.bf16.msra.mxu0 0
    %358 = vmatprep.subr.bf16.mxu0 0
    %359 = vmatpush2.bf16.msra.mxu0 0
    %360 = vmatprep.mubr.bf16.mxu0 0
    %361 = vmatmul.mubr.bf16.gmra.mxu0 %v72
    %v362 = vpop.f32.mrf.mxu0
    %v363 = vadd.f32 %v118, %v362
    %v364 = vpop.f32.mrf.mxu0
    %v365 = vadd.f32 %v122, %v364
    %v366 = vpop.f32.mrf.mxu0
    %v367 = vpop.f32.mrf.mxu0
    %368 = vdwg.mxu0
    %v369 = vld [vmem:[#allocation5] sm:$0xff]
    %v370 = vld [vmem:[#allocation5 + $0x8] sm:$0xff]
    %v371 = vld [vmem:[#allocation5 + $0x10] sm:$0xff]
    %v372 = vld [vmem:[#allocation5 + $0x18] sm:$0xff]
    %v373 = vld [vmem:[#allocation5 + $0x20] sm:$0xff]
    %v374 = vld [vmem:[#allocation5 + $0x28] sm:$0xff]
    %v375 = vld [vmem:[#allocation5 + $0x30] sm:$0xff]
    %v376 = vld [vmem:[#allocation5 + $0x38] sm:$0xff]
    %v385 = vunpack.c.l.b16 %v369
    %v386 = vunpack.c.h.b16 %v369
    %v387 = vunpack.c.l.b16 %v370
    %v388 = vunpack.c.h.b16 %v370
    %v389 = vunpack.c.l.b16 %v371
    %v390 = vunpack.c.h.b16 %v371
    %v391 = vunpack.c.l.b16 %v372
    %v392 = vunpack.c.h.b16 %v372
    %v393 = vunpack.c.l.b16 %v373
    %v394 = vunpack.c.h.b16 %v373
    %v395 = vunpack.c.l.b16 %v374
    %v396 = vunpack.c.h.b16 %v374
    %v397 = vunpack.c.l.b16 %v375
    %v398 = vunpack.c.h.b16 %v375
    %v399 = vunpack.c.l.b16 %v376
    %v400 = vunpack.c.h.b16 %v376
    %v401 = vpack.c.b16 %v389, %v385
    %v402 = vpack.c.b16 %v390, %v386
    %v403 = vpack.c.b16 %v391, %v387
    %v404 = vpack.c.b16 %v392, %v388
    %v405 = vpack.c.b16 %v397, %v393
    %v406 = vpack.c.b16 %v398, %v394
    %v407 = vpack.c.b16 %v399, %v395
    %v408 = vpack.c.b16 %v400, %v396
    %vm417 = vcmask 261120
    %v419 = vsel %vm417, 0, 0
    %421 = vmatprep.subr.bf16.mxu0 0
    %422 = vmatpush1.bf16.msra.mxu0 0
    %423 = vmatprep.subr.bf16.mxu0 0
    %424 = vmatpush1.bf16.msra.mxu0 0
    %425 = vmatprep.subr.bf16.mxu0 0
    %426 = vmatpush1.bf16.msra.mxu0 0
    %427 = vmatprep.subr.bf16.mxu0 0
    %428 = vmatpush1.bf16.msra.mxu0 0
    %429 = vmatprep.subr.bf16.mxu0 0
    %430 = vmatpush1.bf16.msra.mxu0 0
    %431 = vmatprep.subr.bf16.mxu0 0
    %432 = vmatpush1.bf16.msra.mxu0 0
    %433 = vmatprep.subr.bf16.mxu0 %v406
    %434 = vmatpush1.bf16.msra.mxu0 %v405
    %435 = vmatprep.subr.bf16.mxu0 %v402
    %436 = vmatpush1.bf16.msra.mxu0 %v401
    %437 = vmatprep.subr.bf16.mxu0 0
    %438 = vmatpush2.bf16.msra.mxu0 0
    %439 = vmatprep.subr.bf16.mxu0 0
    %440 = vmatpush2.bf16.msra.mxu0 0
    %441 = vmatprep.subr.bf16.mxu0 0
    %442 = vmatpush2.bf16.msra.mxu0 0
    %443 = vmatprep.subr.bf16.mxu0 0
    %444 = vmatpush2.bf16.msra.mxu0 0
    %445 = vmatprep.subr.bf16.mxu0 0
    %446 = vmatpush2.bf16.msra.mxu0 0
    %447 = vmatprep.subr.bf16.mxu0 0
    %448 = vmatpush2.bf16.msra.mxu0 0
    %449 = vmatprep.subr.bf16.mxu0 0
    %450 = vmatpush2.bf16.msra.mxu0 0
    %451 = vmatprep.subr.bf16.mxu0 0
    %452 = vmatpush2.bf16.msra.mxu0 0
    %453 = vmatprep.mubr.bf16.mxu0 0
    %454 = vmatmul.mubr.bf16.gmra.mxu0 %v419
    %v455 = vpop.f32.mrf.mxu0
    %v456 = vadd.f32 0.0, %v455
    %v457 = vpop.f32.mrf.mxu0
    %v458 = vadd.f32 0.0, %v457
    %v459 = vpop.f32.mrf.mxu0
    %v460 = vpop.f32.mrf.mxu0
    %461 = vdwg.mxu0
    %462 = vmatprep.subr.bf16.mxu0 0
    %463 = vmatpush1.bf16.msra.mxu0 0
    %464 = vmatprep.subr.bf16.mxu0 0
    %465 = vmatpush1.bf16.msra.mxu0 0
    %466 = vmatprep.subr.bf16.mxu0 0
    %467 = vmatpush1.bf16.msra.mxu0 0
    %468 = vmatprep.subr.bf16.mxu0 0
    %469 = vmatpush1.bf16.msra.mxu0 0
    %470 = vmatprep.subr.bf16.mxu0 0
    %471 = vmatpush1.bf16.msra.mxu0 0
    %472 = vmatprep.subr.bf16.mxu0 0
    %473 = vmatpush1.bf16.msra.mxu0 0
    %474 = vmatprep.subr.bf16.mxu0 %v408
    %475 = vmatpush1.bf16.msra.mxu0 %v407
    %476 = vmatprep.subr.bf16.mxu0 %v404
    %477 = vmatpush1.bf16.msra.mxu0 %v403
    %478 = vmatprep.subr.bf16.mxu0 0
    %479 = vmatpush2.bf16.msra.mxu0 0
    %480 = vmatprep.subr.bf16.mxu0 0
    %481 = vmatpush2.bf16.msra.mxu0 0
    %482 = vmatprep.subr.bf16.mxu0 0
    %483 = vmatpush2.bf16.msra.mxu0 0
    %484 = vmatprep.subr.bf16.mxu0 0
    %485 = vmatpush2.bf16.msra.mxu0 0
    %486 = vmatprep.subr.bf16.mxu0 0
    %487 = vmatpush2.bf16.msra.mxu0 0
    %488 = vmatprep.subr.bf16.mxu0 0
    %489 = vmatpush2.bf16.msra.mxu0 0
    %490 = vmatprep.subr.bf16.mxu0 0
    %491 = vmatpush2.bf16.msra.mxu0 0
    %492 = vmatprep.subr.bf16.mxu0 0
    %493 = vmatpush2.bf16.msra.mxu0 0
    %494 = vmatprep.mubr.bf16.mxu0 0
    %495 = vmatmul.mubr.bf16.gmra.mxu0 %v419
    %v496 = vpop.f32.mrf.mxu0
    %v497 = vadd.f32 0.0, %v496
    %v498 = vpop.f32.mrf.mxu0
    %v499 = vadd.f32 0.0, %v498
    %v500 = vpop.f32.mrf.mxu0
    %v501 = vpop.f32.mrf.mxu0
    %502 = vdwg.mxu0
    %v503 = vadd.f32 %v322, %v456
    %v504 = vadd.f32 %v324, %v458
    %v505 = vadd.f32 %v363, %v497
    %v506 = vadd.f32 %v365, %v499
    %v507 = vxor.u32 %v503, 2147483648
    %v508 = vmul.f32 %v507, 1.442695
    %v509 = vpow.pop %v508
    %v510 = vadd.f32 %v509, 1.0
    %v511 = vrcp.pop %v510
    %v512 = vmul.f32 1.0, %v511
    %v513 = vxor.u32 %v504, 2147483648
    %v514 = vmul.f32 %v513, 1.442695
    %v515 = vpow.pop %v514
    %v516 = vadd.f32 %v515, 1.0
    %v517 = vrcp.pop %v516
    %v518 = vmul.f32 1.0, %v517
    %v519 = vtanh.pop %v505
    %v520 = vxor.u32 %v506, 2147483648
    %v521 = vmul.f32 %v520, 1.442695
    %v522 = vpow.pop %v521
    %v523 = vadd.f32 %v522, 1.0
    %v524 = vrcp.pop %v523
    %v525 = vmul.f32 1.0, %v524
    %v526 = vmul.f32 %v518, 0.0
    %v527 = vmul.f32 %v512, %v519
    %v528 = vadd.f32 %v526, %v527
    %v529 = vtanh.pop %v528
    %v530 = vmul.f32 %v525, %v529
    %v531 = vpack.c.bf16 %v530, %v530
    %v533 = vsel %vm417, %v531, 0
    %535 = vmatprep.subr.bf16.mxu0 0
    %536 = vmatpush1.bf16.msra.mxu0 0
    %537 = vmatprep.subr.bf16.mxu0 0
    %538 = vmatpush1.bf16.msra.mxu0 0
    %539 = vmatprep.subr.bf16.mxu0 0
    %540 = vmatpush1.bf16.msra.mxu0 0
    %541 = vmatprep.subr.bf16.mxu0 0
    %542 = vmatpush1.bf16.msra.mxu0 0
    %543 = vmatprep.subr.bf16.mxu0 0
    %544 = vmatpush1.bf16.msra.mxu0 0
    %545 = vmatprep.subr.bf16.mxu0 0
    %546 = vmatpush1.bf16.msra.mxu0 0
    %547 = vmatprep.subr.bf16.mxu0 %v406
    %548 = vmatpush1.bf16.msra.mxu0 %v405
    %549 = vmatprep.subr.bf16.mxu0 %v402
    %550 = vmatpush1.bf16.msra.mxu0 %v401
    %551 = vmatprep.subr.bf16.mxu0 0
    %552 = vmatpush2.bf16.msra.mxu0 0
    %553 = vmatprep.subr.bf16.mxu0 0
    %554 = vmatpush2.bf16.msra.mxu0 0
    %555 = vmatprep.subr.bf16.mxu0 0
    %556 = vmatpush2.bf16.msra.mxu0 0
    %557 = vmatprep.subr.bf16.mxu0 0
    %558 = vmatpush2.bf16.msra.mxu0 0
    %559 = vmatprep.subr.bf16.mxu0 0
    %560 = vmatpush2.bf16.msra.mxu0 0
    %561 = vmatprep.subr.bf16.mxu0 0
    %562 = vmatpush2.bf16.msra.mxu0 0
    %563 = vmatprep.subr.bf16.mxu0 0
    %564 = vmatpush2.bf16.msra.mxu0 0
    %565 = vmatprep.subr.bf16.mxu0 0
    %566 = vmatpush2.bf16.msra.mxu0 0
    %567 = vmatprep.mubr.bf16.mxu0 0
    %568 = vmatmul.mubr.bf16.gmra.mxu0 %v533
    %v569 = vpop.f32.mrf.mxu0
    %v570 = vadd.f32 0.0, %v569
    %v571 = vpop.f32.mrf.mxu0
    %v572 = vadd.f32 0.0, %v571
    %v573 = vpop.f32.mrf.mxu0
    %v574 = vpop.f32.mrf.mxu0
    %575 = vdwg.mxu0
    %576 = vmatprep.subr.bf16.mxu0 0
    %577 = vmatpush1.bf16.msra.mxu0 0
    %578 = vmatprep.subr.bf16.mxu0 0
    %579 = vmatpush1.bf16.msra.mxu0 0
    %580 = vmatprep.subr.bf16.mxu0 0
    %581 = vmatpush1.bf16.msra.mxu0 0
    %582 = vmatprep.subr.bf16.mxu0 0
    %583 = vmatpush1.bf16.msra.mxu0 0
    %584 = vmatprep.subr.bf16.mxu0 0
    %585 = vmatpush1.bf16.msra.mxu0 0
    %586 = vmatprep.subr.bf16.mxu0 0
    %587 = vmatpush1.bf16.msra.mxu0 0
    %588 = vmatprep.subr.bf16.mxu0 %v408
    %589 = vmatpush1.bf16.msra.mxu0 %v407
    %590 = vmatprep.subr.bf16.mxu0 %v404
    %591 = vmatpush1.bf16.msra.mxu0 %v403
    %592 = vmatprep.subr.bf16.mxu0 0
    %593 = vmatpush2.bf16.msra.mxu0 0
    %594 = vmatprep.subr.bf16.mxu0 0
    %595 = vmatpush2.bf16.msra.mxu0 0
    %596 = vmatprep.subr.bf16.mxu0 0
    %597 = vmatpush2.bf16.msra.mxu0 0
    %598 = vmatprep.subr.bf16.mxu0 0
    %599 = vmatpush2.bf16.msra.mxu0 0
    %600 = vmatprep.subr.bf16.mxu0 0
    %601 = vmatpush2.bf16.msra.mxu0 0
    %602 = vmatprep.subr.bf16.mxu0 0
    %603 = vmatpush2.bf16.msra.mxu0 0
    %604 = vmatprep.subr.bf16.mxu0 0
    %605 = vmatpush2.bf16.msra.mxu0 0
    %606 = vmatprep.subr.bf16.mxu0 0
    %607 = vmatpush2.bf16.msra.mxu0 0
    %608 = vmatprep.mubr.bf16.mxu0 0
    %609 = vmatmul.mubr.bf16.gmra.mxu0 %v533
    %v610 = vpop.f32.mrf.mxu0
    %v611 = vadd.f32 0.0, %v610
    %v612 = vpop.f32.mrf.mxu0
    %v613 = vadd.f32 0.0, %v612
    %v614 = vpop.f32.mrf.mxu0
    %v615 = vpop.f32.mrf.mxu0
    %616 = vdwg.mxu0
    %v621 = vrot.slane %v570, 7
    %v622 = vrot.slane %v572, 7
    %v623 = vrot.slane %v611, 7
    %v624 = vrot.slane %v613, 7
    %v629 = vadd.f32 %v322, %v621
    %v630 = vadd.f32 %v324, %v622
    %v631 = vadd.f32 %v363, %v623
    %v632 = vadd.f32 %v365, %v624
    %v633 = vxor.u32 %v629, 2147483648
    %v634 = vmul.f32 %v633, 1.442695
    %v635 = vpow.pop %v634
    %v636 = vadd.f32 %v635, 1.0
    %v637 = vrcp.pop %v636
    %v638 = vmul.f32 1.0, %v637
    %v639 = vxor.u32 %v630, 2147483648
    %v640 = vmul.f32 %v639, 1.442695
    %v641 = vpow.pop %v640
    %v642 = vadd.f32 %v641, 1.0
    %v643 = vrcp.pop %v642
    %v644 = vmul.f32 1.0, %v643
    %v645 = vtanh.pop %v631
    %v646 = vxor.u32 %v632, 2147483648
    %v647 = vmul.f32 %v646, 1.442695
    %v648 = vpow.pop %v647
    %v649 = vadd.f32 %v648, 1.0
    %v650 = vrcp.pop %v649
    %v651 = vmul.f32 1.0, %v650
    %v653 = vrot.slane %v528, 7
    %v655 = vmul.f32 %v644, %v653
    %v656 = vmul.f32 %v638, %v645
    %v657 = vadd.f32 %v655, %v656
    %v658 = vtanh.pop %v657
    %v659 = vmul.f32 %v651, %v658
    %v660 = vpack.c.bf16 %v659, %v659
    %v662 = vshrl.u32 %v660, 16
    %v665 = vsel %vm417, %v662, 0
    %667 = vmatprep.subr.bf16.mxu0 0
    %668 = vmatpush1.bf16.msra.mxu0 0
    %669 = vmatprep.subr.bf16.mxu0 0
    %670 = vmatpush1.bf16.msra.mxu0 0
    %671 = vmatprep.subr.bf16.mxu0 0
    %672 = vmatpush1.bf16.msra.mxu0 0
    %673 = vmatprep.subr.bf16.mxu0 0
    %674 = vmatpush1.bf16.msra.mxu0 0
    %675 = vmatprep.subr.bf16.mxu0 0
    %676 = vmatpush1.bf16.msra.mxu0 0
    %677 = vmatprep.subr.bf16.mxu0 0
    %678 = vmatpush1.bf16.msra.mxu0 0
    %679 = vmatprep.subr.bf16.mxu0 %v406
    %680 = vmatpush1.bf16.msra.mxu0 %v405
    %681 = vmatprep.subr.bf16.mxu0 %v402
    %682 = vmatpush1.bf16.msra.mxu0 %v401
    %683 = vmatprep.subr.bf16.mxu0 0
    %684 = vmatpush2.bf16.msra.mxu0 0
    %685 = vmatprep.subr.bf16.mxu0 0
    %686 = vmatpush2.bf16.msra.mxu0 0
    %687 = vmatprep.subr.bf16.mxu0 0
    %688 = vmatpush2.bf16.msra.mxu0 0
    %689 = vmatprep.subr.bf16.mxu0 0
    %690 = vmatpush2.bf16.msra.mxu0 0
    %691 = vmatprep.subr.bf16.mxu0 0
    %692 = vmatpush2.bf16.msra.mxu0 0
    %693 = vmatprep.subr.bf16.mxu0 0
    %694 = vmatpush2.bf16.msra.mxu0 0
    %695 = vmatprep.subr.bf16.mxu0 0
    %696 = vmatpush2.bf16.msra.mxu0 0
    %697 = vmatprep.subr.bf16.mxu0 0
    %698 = vmatpush2.bf16.msra.mxu0 0
    %699 = vmatprep.mubr.bf16.mxu0 0
    %700 = vmatmul.mubr.bf16.gmra.mxu0 %v665
    %v701 = vpop.f32.mrf.mxu0
    %v702 = vadd.f32 0.0, %v701
    %v703 = vpop.f32.mrf.mxu0
    %v704 = vadd.f32 0.0, %v703
    %v705 = vpop.f32.mrf.mxu0
    %v706 = vpop.f32.mrf.mxu0
    %707 = vdwg.mxu0
    %708 = vmatprep.subr.bf16.mxu0 0
    %709 = vmatpush1.bf16.msra.mxu0 0
    %710 = vmatprep.subr.bf16.mxu0 0
    %711 = vmatpush1.bf16.msra.mxu0 0
    %712 = vmatprep.subr.bf16.mxu0 0
    %713 = vmatpush1.bf16.msra.mxu0 0
    %714 = vmatprep.subr.bf16.mxu0 0
    %715 = vmatpush1.bf16.msra.mxu0 0
    %716 = vmatprep.subr.bf16.mxu0 0
    %717 = vmatpush1.bf16.msra.mxu0 0
    %718 = vmatprep.subr.bf16.mxu0 0
    %719 = vmatpush1.bf16.msra.mxu0 0
    %720 = vmatprep.subr.bf16.mxu0 %v408
    %721 = vmatpush1.bf16.msra.mxu0 %v407
    %722 = vmatprep.subr.bf16.mxu0 %v404
    %723 = vmatpush1.bf16.msra.mxu0 %v403
    %724 = vmatprep.subr.bf16.mxu0 0
    %725 = vmatpush2.bf16.msra.mxu0 0
    %726 = vmatprep.subr.bf16.mxu0 0
    %727 = vmatpush2.bf16.msra.mxu0 0
    %728 = vmatprep.subr.bf16.mxu0 0
    %729 = vmatpush2.bf16.msra.mxu0 0
    %730 = vmatprep.subr.bf16.mxu0 0
    %731 = vmatpush2.bf16.msra.mxu0 0
    %732 = vmatprep.subr.bf16.mxu0 0
    %733 = vmatpush2.bf16.msra.mxu0 0
    %734 = vmatprep.subr.bf16.mxu0 0
    %735 = vmatpush2.bf16.msra.mxu0 0
    %736 = vmatprep.subr.bf16.mxu0 0
    %737 = vmatpush2.bf16.msra.mxu0 0
    %738 = vmatprep.subr.bf16.mxu0 0
    %739 = vmatpush2.bf16.msra.mxu0 0
    %740 = vmatprep.mubr.bf16.mxu0 0
    %741 = vmatmul.mubr.bf16.gmra.mxu0 %v665
    %v742 = vpop.f32.mrf.mxu0
    %v743 = vadd.f32 0.0, %v742
    %v744 = vpop.f32.mrf.mxu0
    %v745 = vadd.f32 0.0, %v744
    %v746 = vpop.f32.mrf.mxu0
    %v747 = vpop.f32.mrf.mxu0
    %748 = vdwg.mxu0
    %v753 = vrot.slane %v702, 6
    %v754 = vrot.slane %v704, 6
    %v755 = vrot.slane %v743, 6
    %v756 = vrot.slane %v745, 6
    %v761 = vadd.f32 %v322, %v753
    %v762 = vadd.f32 %v324, %v754
    %v763 = vadd.f32 %v363, %v755
    %v764 = vadd.f32 %v365, %v756
    %v765 = vxor.u32 %v761, 2147483648
    %v766 = vmul.f32 %v765, 1.442695
    %v767 = vpow.pop %v766
    %v768 = vadd.f32 %v767, 1.0
    %v769 = vrcp.pop %v768
    %v770 = vmul.f32 1.0, %v769
    %v771 = vxor.u32 %v762, 2147483648
    %v772 = vmul.f32 %v771, 1.442695
    %v773 = vpow.pop %v772
    %v774 = vadd.f32 %v773, 1.0
    %v775 = vrcp.pop %v774
    %v776 = vmul.f32 1.0, %v775
    %v777 = vtanh.pop %v763
    %v778 = vxor.u32 %v764, 2147483648
    %v779 = vmul.f32 %v778, 1.442695
    %v780 = vpow.pop %v779
    %v781 = vadd.f32 %v780, 1.0
    %v782 = vrcp.pop %v781
    %v783 = vmul.f32 1.0, %v782
    %v785 = vrot.slane %v657, 7
    %v787 = vmul.f32 %v776, %v785
    %v788 = vmul.f32 %v770, %v777
    %v789 = vadd.f32 %v787, %v788
    %v790 = vtanh.pop %v789
    %v791 = vmul.f32 %v783, %v790
    %v792 = vpack.c.bf16 %v791, %v791
    %v794 = vrot.slane %v792, 1
    %v796 = vsel %vm417, %v794, 0
    %798 = vmatprep.subr.bf16.mxu0 0
    %799 = vmatpush1.bf16.msra.mxu0 0
    %800 = vmatprep.subr.bf16.mxu0 0
    %801 = vmatpush1.bf16.msra.mxu0 0
    %802 = vmatprep.subr.bf16.mxu0 0
    %803 = vmatpush1.bf16.msra.mxu0 0
    %804 = vmatprep.subr.bf16.mxu0 0
    %805 = vmatpush1.bf16.msra.mxu0 0
    %806 = vmatprep.subr.bf16.mxu0 0
    %807 = vmatpush1.bf16.msra.mxu0 0
    %808 = vmatprep.subr.bf16.mxu0 0
    %809 = vmatpush1.bf16.msra.mxu0 0
    %810 = vmatprep.subr.bf16.mxu0 %v406
    %811 = vmatpush1.bf16.msra.mxu0 %v405
    %812 = vmatprep.subr.bf16.mxu0 %v402
    %813 = vmatpush1.bf16.msra.mxu0 %v401
    %814 = vmatprep.subr.bf16.mxu0 0
    %815 = vmatpush2.bf16.msra.mxu0 0
    %816 = vmatprep.subr.bf16.mxu0 0
    %817 = vmatpush2.bf16.msra.mxu0 0
    %818 = vmatprep.subr.bf16.mxu0 0
    %819 = vmatpush2.bf16.msra.mxu0 0
    %820 = vmatprep.subr.bf16.mxu0 0
    %821 = vmatpush2.bf16.msra.mxu0 0
    %822 = vmatprep.subr.bf16.mxu0 0
    %823 = vmatpush2.bf16.msra.mxu0 0
    %824 = vmatprep.subr.bf16.mxu0 0
    %825 = vmatpush2.bf16.msra.mxu0 0
    %826 = vmatprep.subr.bf16.mxu0 0
    %827 = vmatpush2.bf16.msra.mxu0 0
    %828 = vmatprep.subr.bf16.mxu0 0
    %829 = vmatpush2.bf16.msra.mxu0 0
    %830 = vmatprep.mubr.bf16.mxu0 0
    %831 = vmatmul.mubr.bf16.gmra.mxu0 %v796
    %v832 = vpop.f32.mrf.mxu0
    %v833 = vadd.f32 0.0, %v832
    %v834 = vpop.f32.mrf.mxu0
    %v835 = vadd.f32 0.0, %v834
    %v836 = vpop.f32.mrf.mxu0
    %v837 = vpop.f32.mrf.mxu0
    %838 = vdwg.mxu0
    %839 = vmatprep.subr.bf16.mxu0 0
    %840 = vmatpush1.bf16.msra.mxu0 0
    %841 = vmatprep.subr.bf16.mxu0 0
    %842 = vmatpush1.bf16.msra.mxu0 0
    %843 = vmatprep.subr.bf16.mxu0 0
    %844 = vmatpush1.bf16.msra.mxu0 0
    %845 = vmatprep.subr.bf16.mxu0 0
    %846 = vmatpush1.bf16.msra.mxu0 0
    %847 = vmatprep.subr.bf16.mxu0 0
    %848 = vmatpush1.bf16.msra.mxu0 0
    %849 = vmatprep.subr.bf16.mxu0 0
    %850 = vmatpush1.bf16.msra.mxu0 0
    %851 = vmatprep.subr.bf16.mxu0 %v408
    %852 = vmatpush1.bf16.msra.mxu0 %v407
    %853 = vmatprep.subr.bf16.mxu0 %v404
    %854 = vmatpush1.bf16.msra.mxu0 %v403
    %855 = vmatprep.subr.bf16.mxu0 0
    %856 = vmatpush2.bf16.msra.mxu0 0
    %857 = vmatprep.subr.bf16.mxu0 0
    %858 = vmatpush2.bf16.msra.mxu0 0
    %859 = vmatprep.subr.bf16.mxu0 0
    %860 = vmatpush2.bf16.msra.mxu0 0
    %861 = vmatprep.subr.bf16.mxu0 0
    %862 = vmatpush2.bf16.msra.mxu0 0
    %863 = vmatprep.subr.bf16.mxu0 0
    %864 = vmatpush2.bf16.msra.mxu0 0
    %865 = vmatprep.subr.bf16.mxu0 0
    %866 = vmatpush2.bf16.msra.mxu0 0
    %867 = vmatprep.subr.bf16.mxu0 0
    %868 = vmatpush2.bf16.msra.mxu0 0
    %869 = vmatprep.subr.bf16.mxu0 0
    %870 = vmatpush2.bf16.msra.mxu0 0
    %871 = vmatprep.mubr.bf16.mxu0 0
    %872 = vmatmul.mubr.bf16.gmra.mxu0 %v796
    %v873 = vpop.f32.mrf.mxu0
    %v874 = vadd.f32 0.0, %v873
    %v875 = vpop.f32.mrf.mxu0
    %v876 = vadd.f32 0.0, %v875
    %v877 = vpop.f32.mrf.mxu0
    %v878 = vpop.f32.mrf.mxu0
    %879 = vdwg.mxu0
    %v884 = vrot.slane %v833, 5
    %v885 = vrot.slane %v835, 5
    %v886 = vrot.slane %v874, 5
    %v887 = vrot.slane %v876, 5
    %v892 = vadd.f32 %v322, %v884
    %v893 = vadd.f32 %v324, %v885
    %v894 = vadd.f32 %v363, %v886
    %v895 = vadd.f32 %v365, %v887
    %v896 = vxor.u32 %v892, 2147483648
    %v897 = vmul.f32 %v896, 1.442695
    %v898 = vpow.pop %v897
    %v899 = vadd.f32 %v898, 1.0
    %v900 = vrcp.pop %v899
    %v901 = vmul.f32 1.0, %v900
    %v902 = vxor.u32 %v893, 2147483648
    %v903 = vmul.f32 %v902, 1.442695
    %v904 = vpow.pop %v903
    %v905 = vadd.f32 %v904, 1.0
    %v906 = vrcp.pop %v905
    %v907 = vmul.f32 1.0, %v906
    %v908 = vtanh.pop %v894
    %v909 = vxor.u32 %v895, 2147483648
    %v910 = vmul.f32 %v909, 1.442695
    %v911 = vpow.pop %v910
    %v912 = vadd.f32 %v911, 1.0
    %v913 = vrcp.pop %v912
    %v914 = vmul.f32 1.0, %v913
    %v916 = vrot.slane %v789, 7
    %v918 = vmul.f32 %v907, %v916
    %v919 = vmul.f32 %v901, %v908
    %v920 = vadd.f32 %v918, %v919
    %v921 = vtanh.pop %v920
    %v922 = vmul.f32 %v914, %v921
    %v923 = vpack.c.bf16 %v922, %v922
    %v925 = vshrl.u32 %v923, 16
    %v927 = vrot.slane %v925, 1
    %v929 = vsel %vm417, %v927, 0
    %931 = vmatprep.subr.bf16.mxu0 0
    %932 = vmatpush1.bf16.msra.mxu0 0
    %933 = vmatprep.subr.bf16.mxu0 0
    %934 = vmatpush1.bf16.msra.mxu0 0
    %935 = vmatprep.subr.bf16.mxu0 0
    %936 = vmatpush1.bf16.msra.mxu0 0
    %937 = vmatprep.subr.bf16.mxu0 0
    %938 = vmatpush1.bf16.msra.mxu0 0
    %939 = vmatprep.subr.bf16.mxu0 0
    %940 = vmatpush1.bf16.msra.mxu0 0
    %941 = vmatprep.subr.bf16.mxu0 0
    %942 = vmatpush1.bf16.msra.mxu0 0
    %943 = vmatprep.subr.bf16.mxu0 %v406
    %944 = vmatpush1.bf16.msra.mxu0 %v405
    %945 = vmatprep.subr.bf16.mxu0 %v402
    %946 = vmatpush1.bf16.msra.mxu0 %v401
    %947 = vmatprep.subr.bf16.mxu0 0
    %948 = vmatpush2.bf16.msra.mxu0 0
    %949 = vmatprep.subr.bf16.mxu0 0
    %950 = vmatpush2.bf16.msra.mxu0 0
    %951 = vmatprep.subr.bf16.mxu0 0
    %952 = vmatpush2.bf16.msra.mxu0 0
    %953 = vmatprep.subr.bf16.mxu0 0
    %954 = vmatpush2.bf16.msra.mxu0 0
    %955 = vmatprep.subr.bf16.mxu0 0
    %956 = vmatpush2.bf16.msra.mxu0 0
    %957 = vmatprep.subr.bf16.mxu0 0
    %958 = vmatpush2.bf16.msra.mxu0 0
    %959 = vmatprep.subr.bf16.mxu0 0
    %960 = vmatpush2.bf16.msra.mxu0 0
    %961 = vmatprep.subr.bf16.mxu0 0
    %962 = vmatpush2.bf16.msra.mxu0 0
    %963 = vmatprep.mubr.bf16.mxu0 0
    %964 = vmatmul.mubr.bf16.gmra.mxu0 %v929
    %v965 = vpop.f32.mrf.mxu0
    %v966 = vadd.f32 0.0, %v965
    %v967 = vpop.f32.mrf.mxu0
    %v968 = vadd.f32 0.0, %v967
    %v969 = vpop.f32.mrf.mxu0
    %v970 = vpop.f32.mrf.mxu0
    %971 = vdwg.mxu0
    %972 = vmatprep.subr.bf16.mxu0 0
    %973 = vmatpush1.bf16.msra.mxu0 0
    %974 = vmatprep.subr.bf16.mxu0 0
    %975 = vmatpush1.bf16.msra.mxu0 0
    %976 = vmatprep.subr.bf16.mxu0 0
    %977 = vmatpush1.bf16.msra.mxu0 0
    %978 = vmatprep.subr.bf16.mxu0 0
    %979 = vmatpush1.bf16.msra.mxu0 0
    %980 = vmatprep.subr.bf16.mxu0 0
    %981 = vmatpush1.bf16.msra.mxu0 0
    %982 = vmatprep.subr.bf16.mxu0 0
    %983 = vmatpush1.bf16.msra.mxu0 0
    %984 = vmatprep.subr.bf16.mxu0 %v408
    %985 = vmatpush1.bf16.msra.mxu0 %v407
    %986 = vmatprep.subr.bf16.mxu0 %v404
    %987 = vmatpush1.bf16.msra.mxu0 %v403
    %988 = vmatprep.subr.bf16.mxu0 0
    %989 = vmatpush2.bf16.msra.mxu0 0
    %990 = vmatprep.subr.bf16.mxu0 0
    %991 = vmatpush2.bf16.msra.mxu0 0
    %992 = vmatprep.subr.bf16.mxu0 0
    %993 = vmatpush2.bf16.msra.mxu0 0
    %994 = vmatprep.subr.bf16.mxu0 0
    %995 = vmatpush2.bf16.msra.mxu0 0
    %996 = vmatprep.subr.bf16.mxu0 0
    %997 = vmatpush2.bf16.msra.mxu0 0
    %998 = vmatprep.subr.bf16.mxu0 0
    %999 = vmatpush2.bf16.msra.mxu0 0
    %1000 = vmatprep.subr.bf16.mxu0 0
    %1001 = vmatpush2.bf16.msra.mxu0 0
    %1002 = vmatprep.subr.bf16.mxu0 0
    %1003 = vmatpush2.bf16.msra.mxu0 0
    %1004 = vmatprep.mubr.bf16.mxu0 0
    %1005 = vmatmul.mubr.bf16.gmra.mxu0 %v929
    %v1006 = vpop.f32.mrf.mxu0
    %v1007 = vadd.f32 0.0, %v1006
    %v1008 = vpop.f32.mrf.mxu0
    %v1009 = vadd.f32 0.0, %v1008
    %v1010 = vpop.f32.mrf.mxu0
    %v1011 = vpop.f32.mrf.mxu0
    %1012 = vdwg.mxu0
    %v1017 = vrot.slane %v966, 4
    %v1018 = vrot.slane %v968, 4
    %v1019 = vrot.slane %v1007, 4
    %v1020 = vrot.slane %v1009, 4
    %v1025 = vadd.f32 %v322, %v1017
    %v1026 = vadd.f32 %v324, %v1018
    %v1027 = vadd.f32 %v363, %v1019
    %v1028 = vadd.f32 %v365, %v1020
    %v1029 = vxor.u32 %v1025, 2147483648
    %v1030 = vmul.f32 %v1029, 1.442695
    %v1031 = vpow.pop %v1030
    %v1032 = vadd.f32 %v1031, 1.0
    %v1033 = vrcp.pop %v1032
    %v1034 = vmul.f32 1.0, %v1033
    %v1035 = vxor.u32 %v1026, 2147483648
    %v1036 = vmul.f32 %v1035, 1.442695
    %v1037 = vpow.pop %v1036
    %v1038 = vadd.f32 %v1037, 1.0
    %v1039 = vrcp.pop %v1038
    %v1040 = vmul.f32 1.0, %v1039
    %v1041 = vtanh.pop %v1027
    %v1042 = vxor.u32 %v1028, 2147483648
    %v1043 = vmul.f32 %v1042, 1.442695
    %v1044 = vpow.pop %v1043
    %v1045 = vadd.f32 %v1044, 1.0
    %v1046 = vrcp.pop %v1045
    %v1047 = vmul.f32 1.0, %v1046
    %v1049 = vrot.slane %v920, 7
    %v1051 = vmul.f32 %v1040, %v1049
    %v1052 = vmul.f32 %v1034, %v1041
    %v1053 = vadd.f32 %v1051, %v1052
    %v1054 = vtanh.pop %v1053
    %v1055 = vmul.f32 %v1047, %v1054
    %v1056 = vpack.c.bf16 %v1055, %v1055
    %v1058 = vrot.slane %v1056, 2
    %v1060 = vsel %vm417, %v1058, 0
    %1062 = vmatprep.subr.bf16.mxu0 0
    %1063 = vmatpush1.bf16.msra.mxu0 0
    %1064 = vmatprep.subr.bf16.mxu0 0
    %1065 = vmatpush1.bf16.msra.mxu0 0
    %1066 = vmatprep.subr.bf16.mxu0 0
    %1067 = vmatpush1.bf16.msra.mxu0 0
    %1068 = vmatprep.subr.bf16.mxu0 0
    %1069 = vmatpush1.bf16.msra.mxu0 0
    %1070 = vmatprep.subr.bf16.mxu0 0
    %1071 = vmatpush1.bf16.msra.mxu0 0
    %1072 = vmatprep.subr.bf16.mxu0 0
    %1073 = vmatpush1.bf16.msra.mxu0 0
    %1074 = vmatprep.subr.bf16.mxu0 %v406
    %1075 = vmatpush1.bf16.msra.mxu0 %v405
    %1076 = vmatprep.subr.bf16.mxu0 %v402
    %1077 = vmatpush1.bf16.msra.mxu0 %v401
    %1078 = vmatprep.subr.bf16.mxu0 0
    %1079 = vmatpush2.bf16.msra.mxu0 0
    %1080 = vmatprep.subr.bf16.mxu0 0
    %1081 = vmatpush2.bf16.msra.mxu0 0
    %1082 = vmatprep.subr.bf16.mxu0 0
    %1083 = vmatpush2.bf16.msra.mxu0 0
    %1084 = vmatprep.subr.bf16.mxu0 0
    %1085 = vmatpush2.bf16.msra.mxu0 0
    %1086 = vmatprep.subr.bf16.mxu0 0
    %1087 = vmatpush2.bf16.msra.mxu0 0
    %1088 = vmatprep.subr.bf16.mxu0 0
    %1089 = vmatpush2.bf16.msra.mxu0 0
    %1090 = vmatprep.subr.bf16.mxu0 0
    %1091 = vmatpush2.bf16.msra.mxu0 0
    %1092 = vmatprep.subr.bf16.mxu0 0
    %1093 = vmatpush2.bf16.msra.mxu0 0
    %1094 = vmatprep.mubr.bf16.mxu0 0
    %1095 = vmatmul.mubr.bf16.gmra.mxu0 %v1060
    %v1096 = vpop.f32.mrf.mxu0
    %v1097 = vadd.f32 0.0, %v1096
    %v1098 = vpop.f32.mrf.mxu0
    %v1099 = vadd.f32 0.0, %v1098
    %v1100 = vpop.f32.mrf.mxu0
    %v1101 = vpop.f32.mrf.mxu0
    %1102 = vdwg.mxu0
    %1103 = vmatprep.subr.bf16.mxu0 0
    %1104 = vmatpush1.bf16.msra.mxu0 0
    %1105 = vmatprep.subr.bf16.mxu0 0
    %1106 = vmatpush1.bf16.msra.mxu0 0
    %1107 = vmatprep.subr.bf16.mxu0 0
    %1108 = vmatpush1.bf16.msra.mxu0 0
    %1109 = vmatprep.subr.bf16.mxu0 0
    %1110 = vmatpush1.bf16.msra.mxu0 0
    %1111 = vmatprep.subr.bf16.mxu0 0
    %1112 = vmatpush1.bf16.msra.mxu0 0
    %1113 = vmatprep.subr.bf16.mxu0 0
    %1114 = vmatpush1.bf16.msra.mxu0 0
    %1115 = vmatprep.subr.bf16.mxu0 %v408
    %1116 = vmatpush1.bf16.msra.mxu0 %v407
    %1117 = vmatprep.subr.bf16.mxu0 %v404
    %1118 = vmatpush1.bf16.msra.mxu0 %v403
    %1119 = vmatprep.subr.bf16.mxu0 0
    %1120 = vmatpush2.bf16.msra.mxu0 0
    %1121 = vmatprep.subr.bf16.mxu0 0
    %1122 = vmatpush2.bf16.msra.mxu0 0
    %1123 = vmatprep.subr.bf16.mxu0 0
    %1124 = vmatpush2.bf16.msra.mxu0 0
    %1125 = vmatprep.subr.bf16.mxu0 0
    %1126 = vmatpush2.bf16.msra.mxu0 0
    %1127 = vmatprep.subr.bf16.mxu0 0
    %1128 = vmatpush2.bf16.msra.mxu0 0
    %1129 = vmatprep.subr.bf16.mxu0 0
    %1130 = vmatpush2.bf16.msra.mxu0 0
    %1131 = vmatprep.subr.bf16.mxu0 0
    %1132 = vmatpush2.bf16.msra.mxu0 0
    %1133 = vmatprep.subr.bf16.mxu0 0
    %1134 = vmatpush2.bf16.msra.mxu0 0
    %1135 = vmatprep.mubr.bf16.mxu0 0
    %1136 = vmatmul.mubr.bf16.gmra.mxu0 %v1060
    %v1137 = vpop.f32.mrf.mxu0
    %v1138 = vadd.f32 0.0, %v1137
    %v1139 = vpop.f32.mrf.mxu0
    %v1140 = vadd.f32 0.0, %v1139
    %v1141 = vpop.f32.mrf.mxu0
    %v1142 = vpop.f32.mrf.mxu0
    %1143 = vdwg.mxu0
    %v1148 = vrot.slane %v1097, 3
    %v1149 = vrot.slane %v1099, 3
    %v1150 = vrot.slane %v1138, 3
    %v1151 = vrot.slane %v1140, 3
    %v1156 = vadd.f32 %v322, %v1148
    %v1157 = vadd.f32 %v324, %v1149
    %v1158 = vadd.f32 %v363, %v1150
    %v1159 = vadd.f32 %v365, %v1151
    %v1160 = vxor.u32 %v1156, 2147483648
    %v1161 = vmul.f32 %v1160, 1.442695
    %v1162 = vpow.pop %v1161
    %v1163 = vadd.f32 %v1162, 1.0
    %v1164 = vrcp.pop %v1163
    %v1165 = vmul.f32 1.0, %v1164
    %v1166 = vxor.u32 %v1157, 2147483648
    %v1167 = vmul.f32 %v1166, 1.442695
    %v1168 = vpow.pop %v1167
    %v1169 = vadd.f32 %v1168, 1.0
    %v1170 = vrcp.pop %v1169
    %v1171 = vmul.f32 1.0, %v1170
    %v1172 = vtanh.pop %v1158
    %v1173 = vxor.u32 %v1159, 2147483648
    %v1174 = vmul.f32 %v1173, 1.442695
    %v1175 = vpow.pop %v1174
    %v1176 = vadd.f32 %v1175, 1.0
    %v1177 = vrcp.pop %v1176
    %v1178 = vmul.f32 1.0, %v1177
    %v1180 = vrot.slane %v1053, 7
    %v1182 = vmul.f32 %v1171, %v1180
    %v1183 = vmul.f32 %v1165, %v1172
    %v1184 = vadd.f32 %v1182, %v1183
    %v1185 = vtanh.pop %v1184
    %v1186 = vmul.f32 %v1178, %v1185
    %v1187 = vpack.c.bf16 %v1186, %v1186
    %v1189 = vshrl.u32 %v1187, 16
    %v1191 = vrot.slane %v1189, 2
    %v1193 = vsel %vm417, %v1191, 0
    %1195 = vmatprep.subr.bf16.mxu0 0
    %1196 = vmatpush1.bf16.msra.mxu0 0
    %1197 = vmatprep.subr.bf16.mxu0 0
    %1198 = vmatpush1.bf16.msra.mxu0 0
    %1199 = vmatprep.subr.bf16.mxu0 0
    %1200 = vmatpush1.bf16.msra.mxu0 0
    %1201 = vmatprep.subr.bf16.mxu0 0
    %1202 = vmatpush1.bf16.msra.mxu0 0
    %1203 = vmatprep.subr.bf16.mxu0 0
    %1204 = vmatpush1.bf16.msra.mxu0 0
    %1205 = vmatprep.subr.bf16.mxu0 0
    %1206 = vmatpush1.bf16.msra.mxu0 0
    %1207 = vmatprep.subr.bf16.mxu0 %v406
    %1208 = vmatpush1.bf16.msra.mxu0 %v405
    %1209 = vmatprep.subr.bf16.mxu0 %v402
    %1210 = vmatpush1.bf16.msra.mxu0 %v401
    %1211 = vmatprep.subr.bf16.mxu0 0
    %1212 = vmatpush2.bf16.msra.mxu0 0
    %1213 = vmatprep.subr.bf16.mxu0 0
    %1214 = vmatpush2.bf16.msra.mxu0 0
    %1215 = vmatprep.subr.bf16.mxu0 0
    %1216 = vmatpush2.bf16.msra.mxu0 0
    %1217 = vmatprep.subr.bf16.mxu0 0
    %1218 = vmatpush2.bf16.msra.mxu0 0
    %1219 = vmatprep.subr.bf16.mxu0 0
    %1220 = vmatpush2.bf16.msra.mxu0 0
    %1221 = vmatprep.subr.bf16.mxu0 0
    %1222 = vmatpush2.bf16.msra.mxu0 0
    %1223 = vmatprep.subr.bf16.mxu0 0
    %1224 = vmatpush2.bf16.msra.mxu0 0
    %1225 = vmatprep.subr.bf16.mxu0 0
    %1226 = vmatpush2.bf16.msra.mxu0 0
    %1227 = vmatprep.mubr.bf16.mxu0 0
    %1228 = vmatmul.mubr.bf16.gmra.mxu0 %v1193
    %v1229 = vpop.f32.mrf.mxu0
    %v1230 = vadd.f32 0.0, %v1229
    %v1231 = vpop.f32.mrf.mxu0
    %v1232 = vadd.f32 0.0, %v1231
    %v1233 = vpop.f32.mrf.mxu0
    %v1234 = vpop.f32.mrf.mxu0
    %1235 = vdwg.mxu0
    %1236 = vmatprep.subr.bf16.mxu0 0
    %1237 = vmatpush1.bf16.msra.mxu0 0
    %1238 = vmatprep.subr.bf16.mxu0 0
    %1239 = vmatpush1.bf16.msra.mxu0 0
    %1240 = vmatprep.subr.bf16.mxu0 0
    %1241 = vmatpush1.bf16.msra.mxu0 0
    %1242 = vmatprep.subr.bf16.mxu0 0
    %1243 = vmatpush1.bf16.msra.mxu0 0
    %1244 = vmatprep.subr.bf16.mxu0 0
    %1245 = vmatpush1.bf16.msra.mxu0 0
    %1246 = vmatprep.subr.bf16.mxu0 0
    %1247 = vmatpush1.bf16.msra.mxu0 0
    %1248 = vmatprep.subr.bf16.mxu0 %v408
    %1249 = vmatpush1.bf16.msra.mxu0 %v407
    %1250 = vmatprep.subr.bf16.mxu0 %v404
    %1251 = vmatpush1.bf16.msra.mxu0 %v403
    %1252 = vmatprep.subr.bf16.mxu0 0
    %1253 = vmatpush2.bf16.msra.mxu0 0
    %1254 = vmatprep.subr.bf16.mxu0 0
    %1255 = vmatpush2.bf16.msra.mxu0 0
    %1256 = vmatprep.subr.bf16.mxu0 0
    %1257 = vmatpush2.bf16.msra.mxu0 0
    %1258 = vmatprep.subr.bf16.mxu0 0
    %1259 = vmatpush2.bf16.msra.mxu0 0
    %1260 = vmatprep.subr.bf16.mxu0 0
    %1261 = vmatpush2.bf16.msra.mxu0 0
    %1262 = vmatprep.subr.bf16.mxu0 0
    %1263 = vmatpush2.bf16.msra.mxu0 0
    %1264 = vmatprep.subr.bf16.mxu0 0
    %1265 = vmatpush2.bf16.msra.mxu0 0
    %1266 = vmatprep.subr.bf16.mxu0 0
    %1267 = vmatpush2.bf16.msra.mxu0 0
    %1268 = vmatprep.mubr.bf16.mxu0 0
    %1269 = vmatmul.mubr.bf16.gmra.mxu0 %v1193
    %v1270 = vpop.f32.mrf.mxu0
    %v1271 = vadd.f32 0.0, %v1270
    %v1272 = vpop.f32.mrf.mxu0
    %v1273 = vadd.f32 0.0, %v1272
    %v1274 = vpop.f32.mrf.mxu0
    %v1275 = vpop.f32.mrf.mxu0
    %1276 = vdwg.mxu0
    %v1281 = vrot.slane %v1230, 2
    %v1282 = vrot.slane %v1232, 2
    %v1283 = vrot.slane %v1271, 2
    %v1284 = vrot.slane %v1273, 2
    %v1289 = vadd.f32 %v322, %v1281
    %v1290 = vadd.f32 %v324, %v1282
    %v1291 = vadd.f32 %v363, %v1283
    %v1292 = vadd.f32 %v365, %v1284
    %v1293 = vxor.u32 %v1289, 2147483648
    %v1294 = vmul.f32 %v1293, 1.442695
    %v1295 = vpow.pop %v1294
    %v1296 = vadd.f32 %v1295, 1.0
    %v1297 = vrcp.pop %v1296
    %v1298 = vmul.f32 1.0, %v1297
    %v1299 = vxor.u32 %v1290, 2147483648
    %v1300 = vmul.f32 %v1299, 1.442695
    %v1301 = vpow.pop %v1300
    %v1302 = vadd.f32 %v1301, 1.0
    %v1303 = vrcp.pop %v1302
    %v1304 = vmul.f32 1.0, %v1303
    %v1305 = vtanh.pop %v1291
    %v1306 = vxor.u32 %v1292, 2147483648
    %v1307 = vmul.f32 %v1306, 1.442695
    %v1308 = vpow.pop %v1307
    %v1309 = vadd.f32 %v1308, 1.0
    %v1310 = vrcp.pop %v1309
    %v1311 = vmul.f32 1.0, %v1310
    %v1313 = vrot.slane %v1184, 7
    %v1315 = vmul.f32 %v1304, %v1313
    %v1316 = vmul.f32 %v1298, %v1305
    %v1317 = vadd.f32 %v1315, %v1316
    %v1318 = vtanh.pop %v1317
    %v1319 = vmul.f32 %v1311, %v1318
    %v1320 = vpack.c.bf16 %v1319, %v1319
    %v1322 = vrot.slane %v1320, 3
    %v1324 = vsel %vm417, %v1322, 0
    %1326 = vmatprep.subr.bf16.mxu0 0
    %1327 = vmatpush1.bf16.msra.mxu0 0
    %1328 = vmatprep.subr.bf16.mxu0 0
    %1329 = vmatpush1.bf16.msra.mxu0 0
    %1330 = vmatprep.subr.bf16.mxu0 0
    %1331 = vmatpush1.bf16.msra.mxu0 0
    %1332 = vmatprep.subr.bf16.mxu0 0
    %1333 = vmatpush1.bf16.msra.mxu0 0
    %1334 = vmatprep.subr.bf16.mxu0 0
    %1335 = vmatpush1.bf16.msra.mxu0 0
    %1336 = vmatprep.subr.bf16.mxu0 0
    %1337 = vmatpush1.bf16.msra.mxu0 0
    %1338 = vmatprep.subr.bf16.mxu0 %v406
    %1339 = vmatpush1.bf16.msra.mxu0 %v405
    %1340 = vmatprep.subr.bf16.mxu0 %v402
    %1341 = vmatpush1.bf16.msra.mxu0 %v401
    %1342 = vmatprep.subr.bf16.mxu0 0
    %1343 = vmatpush2.bf16.msra.mxu0 0
    %1344 = vmatprep.subr.bf16.mxu0 0
    %1345 = vmatpush2.bf16.msra.mxu0 0
    %1346 = vmatprep.subr.bf16.mxu0 0
    %1347 = vmatpush2.bf16.msra.mxu0 0
    %1348 = vmatprep.subr.bf16.mxu0 0
    %1349 = vmatpush2.bf16.msra.mxu0 0
    %1350 = vmatprep.subr.bf16.mxu0 0
    %1351 = vmatpush2.bf16.msra.mxu0 0
    %1352 = vmatprep.subr.bf16.mxu0 0
    %1353 = vmatpush2.bf16.msra.mxu0 0
    %1354 = vmatprep.subr.bf16.mxu0 0
    %1355 = vmatpush2.bf16.msra.mxu0 0
    %1356 = vmatprep.subr.bf16.mxu0 0
    %1357 = vmatpush2.bf16.msra.mxu0 0
    %1358 = vmatprep.mubr.bf16.mxu0 0
    %1359 = vmatmul.mubr.bf16.gmra.mxu0 %v1324
    %v1360 = vpop.f32.mrf.mxu0
    %v1361 = vadd.f32 0.0, %v1360
    %v1362 = vpop.f32.mrf.mxu0
    %v1363 = vadd.f32 0.0, %v1362
    %v1364 = vpop.f32.mrf.mxu0
    %v1365 = vpop.f32.mrf.mxu0
    %1366 = vdwg.mxu0
    %1367 = vmatprep.subr.bf16.mxu0 0
    %1368 = vmatpush1.bf16.msra.mxu0 0
    %1369 = vmatprep.subr.bf16.mxu0 0
    %1370 = vmatpush1.bf16.msra.mxu0 0
    %1371 = vmatprep.subr.bf16.mxu0 0
    %1372 = vmatpush1.bf16.msra.mxu0 0
    %1373 = vmatprep.subr.bf16.mxu0 0
    %1374 = vmatpush1.bf16.msra.mxu0 0
    %1375 = vmatprep.subr.bf16.mxu0 0
    %1376 = vmatpush1.bf16.msra.mxu0 0
    %1377 = vmatprep.subr.bf16.mxu0 0
    %1378 = vmatpush1.bf16.msra.mxu0 0
    %1379 = vmatprep.subr.bf16.mxu0 %v408
    %1380 = vmatpush1.bf16.msra.mxu0 %v407
    %1381 = vmatprep.subr.bf16.mxu0 %v404
    %1382 = vmatpush1.bf16.msra.mxu0 %v403
    %1383 = vmatprep.subr.bf16.mxu0 0
    %1384 = vmatpush2.bf16.msra.mxu0 0
    %1385 = vmatprep.subr.bf16.mxu0 0
    %1386 = vmatpush2.bf16.msra.mxu0 0
    %1387 = vmatprep.subr.bf16.mxu0 0
    %1388 = vmatpush2.bf16.msra.mxu0 0
    %1389 = vmatprep.subr.bf16.mxu0 0
    %1390 = vmatpush2.bf16.msra.mxu0 0
    %1391 = vmatprep.subr.bf16.mxu0 0
    %1392 = vmatpush2.bf16.msra.mxu0 0
    %1393 = vmatprep.subr.bf16.mxu0 0
    %1394 = vmatpush2.bf16.msra.mxu0 0
    %1395 = vmatprep.subr.bf16.mxu0 0
    %1396 = vmatpush2.bf16.msra.mxu0 0
    %1397 = vmatprep.subr.bf16.mxu0 0
    %1398 = vmatpush2.bf16.msra.mxu0 0
    %1399 = vmatprep.mubr.bf16.mxu0 0
    %1400 = vmatmul.mubr.bf16.gmra.mxu0 %v1324
    %v1401 = vpop.f32.mrf.mxu0
    %v1402 = vadd.f32 0.0, %v1401
    %v1403 = vpop.f32.mrf.mxu0
    %v1404 = vadd.f32 0.0, %v1403
    %v1405 = vpop.f32.mrf.mxu0
    %v1406 = vpop.f32.mrf.mxu0
    %1407 = vdwg.mxu0
    %v1412 = vrot.slane %v1361, 1
    %v1413 = vrot.slane %v1363, 1
    %v1414 = vrot.slane %v1402, 1
    %v1415 = vrot.slane %v1404, 1
    %v1420 = vadd.f32 %v322, %v1412
    %v1421 = vadd.f32 %v324, %v1413
    %v1422 = vadd.f32 %v363, %v1414
    %v1423 = vadd.f32 %v365, %v1415
    %v1424 = vxor.u32 %v1420, 2147483648
    %v1425 = vmul.f32 %v1424, 1.442695
    %v1426 = vpow.pop %v1425
    %v1427 = vadd.f32 %v1426, 1.0
    %v1428 = vrcp.pop %v1427
    %v1429 = vmul.f32 1.0, %v1428
    %v1430 = vxor.u32 %v1421, 2147483648
    %v1431 = vmul.f32 %v1430, 1.442695
    %v1432 = vpow.pop %v1431
    %v1433 = vadd.f32 %v1432, 1.0
    %v1434 = vrcp.pop %v1433
    %v1435 = vmul.f32 1.0, %v1434
    %v1436 = vtanh.pop %v1422
    %v1437 = vxor.u32 %v1423, 2147483648
    %v1438 = vmul.f32 %v1437, 1.442695
    %v1439 = vpow.pop %v1438
    %v1440 = vadd.f32 %v1439, 1.0
    %v1441 = vrcp.pop %v1440
    %v1442 = vmul.f32 1.0, %v1441
    %v1444 = vrot.slane %v1317, 7
    %v1446 = vmul.f32 %v1435, %v1444
    %v1447 = vmul.f32 %v1429, %v1436
    %v1448 = vadd.f32 %v1446, %v1447
    %v1449 = vtanh.pop %v1448
    %v1450 = vmul.f32 %v1442, %v1449
    %v1451 = vpack.c.bf16 %v1450, %v1450
    %v1452 = vld [vmem:[%s4] sm:$0xf]
    %v1453 = vld [vmem:[%s4 + $0x4] sm:$0xf]
    %v1454 = vld [vmem:[%s4 + $0x8] sm:$0xf]
    %v1455 = vld [vmem:[%s4 + $0xc] sm:$0xf]
    %v1456 = vld [vmem:[%s5] sm:$0x1]
    %v1458 = vshrl.u32 %v1451, 16
    %v1460 = vrot.slane %v1458, 3
    %v1465 = vunpack.c.l.b16 %v1452
    %v1466 = vunpack.c.l.b16 %v1453
    %v1467 = vunpack.c.l.b16 %v1454
    %v1468 = vunpack.c.l.b16 %v1455
    %v1469 = vpack.c.b16 %v1466, %v1465
    %v1470 = vpack.c.b16 %v1468, %v1467
    %v1474 = vsel %vm417, %v1460, 0
    %1476 = vmatprep.subr.bf16.mxu0 0
    %1477 = vmatpush1.bf16.msra.mxu0 0
    %1478 = vmatprep.subr.bf16.mxu0 0
    %1479 = vmatpush1.bf16.msra.mxu0 0
    %1480 = vmatprep.subr.bf16.mxu0 0
    %1481 = vmatpush1.bf16.msra.mxu0 0
    %1482 = vmatprep.subr.bf16.mxu0 0
    %1483 = vmatpush1.bf16.msra.mxu0 0
    %1484 = vmatprep.subr.bf16.mxu0 0
    %1485 = vmatpush1.bf16.msra.mxu0 0
    %1486 = vmatprep.subr.bf16.mxu0 0
    %1487 = vmatpush1.bf16.msra.mxu0 0
    %1488 = vmatprep.subr.bf16.mxu0 0
    %1489 = vmatpush1.bf16.msra.mxu0 %v1470
    %1490 = vmatprep.subr.bf16.mxu0 0
    %1491 = vmatpush1.bf16.msra.mxu0 %v1469
    %1492 = vmatprep.subr.bf16.mxu0 0
    %1493 = vmatpush2.bf16.msra.mxu0 0
    %1494 = vmatprep.subr.bf16.mxu0 0
    %1495 = vmatpush2.bf16.msra.mxu0 0
    %1496 = vmatprep.subr.bf16.mxu0 0
    %1497 = vmatpush2.bf16.msra.mxu0 0
    %1498 = vmatprep.subr.bf16.mxu0 0
    %1499 = vmatpush2.bf16.msra.mxu0 0
    %1500 = vmatprep.subr.bf16.mxu0 0
    %1501 = vmatpush2.bf16.msra.mxu0 0
    %1502 = vmatprep.subr.bf16.mxu0 0
    %1503 = vmatpush2.bf16.msra.mxu0 0
    %1504 = vmatprep.subr.bf16.mxu0 0
    %1505 = vmatpush2.bf16.msra.mxu0 0
    %1506 = vmatprep.subr.bf16.mxu0 0
    %1507 = vmatpush2.bf16.msra.mxu0 0
    %1508 = vmatprep.mubr.bf16.mxu0 0
    %1509 = vmatmul.mubr.bf16.gmra.mxu0 %v1474
    %v1510 = vpop.f32.mrf.mxu0
    %v1511 = vadd.f32 %v1456, %v1510
    %v1512 = vpop.f32.mrf.mxu0
    %v1513 = vpop.f32.mrf.mxu0
    %v1514 = vpop.f32.mrf.mxu0
    %1515 = vdwg.mxu0
    %1516 = vst [vmem:[#allocation8] sm:$0x1] %v1511
    // Predicated region
    $region38: #{tpu_custom_call.1} parent=1 // pred_check
      _
    $region39: #{tpu_custom_call.1} parent=1 // pred_check_branch
      %1518 = sbr.rel (0) target = $region41
    $region40: #{tpu_custom_call.1} parent=1 // pred_region
      %s1520 = ssub.s32 16, 16
      %1521 = vsyncadd [#allocation4], %s1520
      %s1523 = sshll.u32 [#allocation8], 4
      %s1524 = int_to_ptr.vmem [resolvable:$true] %s1523
      %1526 = dma.vmem_to_hbm [thread:$0]  %s1524, 16, %s6, [#allocation4]
    $region41: #{tpu_custom_call.1} parent=1 // pred_fallthru
      _
    // Predicated region
    $region42: #{tpu_custom_call.1} parent=1 // pred_check
      _
    $region43: #{tpu_custom_call.1} parent=1 // pred_check_branch
      %1528 = sbr.rel (0) target = $region45
    $region44: #{tpu_custom_call.1} parent=1 // pred_region
      %1529 = dma.done [#allocation4], 16
    $region45: #{tpu_custom_call.1} parent=1 // pred_fallthru
      _
    %1530 = vsyncpa [#allocation3], 1
    %1531 = vsyncpa [#allocation6], 1
    %1532 = vsyncpa [#allocation4], 1

</llo_original>
